<compile_context>
chip_gen: v6e
topology: v6e:2x2x1
jax: 0.10.0
libtpu: 0.0.40
codegen_flags: <defaults>
</compile_context>

<pallas_src>
import functools
import numpy as np
import jax
import jax.numpy as jnp
from jax.experimental import pallas as pl
from jax.experimental.pallas import tpu as pltpu

_VMEM_LIMIT = 48 * 1024 * 1024   # <= 48 MiB: safe on v7x (64 MiB physical VMEM)


# ----------------------------------------------------------------------------------
# small helpers
# ----------------------------------------------------------------------------------

def _round_up(x, m):
    return (x + m - 1) // m * m


def _choose_m_tile(M):
    """(padded M, M-tile). One tile for small M, 512-row tiles for large M."""
    if M <= 512:
        mp = _round_up(M, 8)
        return mp, mp
    return _round_up(M, 512), 512


# ----------------------------------------------------------------------------------
# fused matmul kernel: out = [scale *] act(A @ W + bias) [+ shift]
# A is bf16, W is bf16 (pre-padded), accumulation f32, epilogue f32.
# ----------------------------------------------------------------------------------

def _mm_kernel(a_ref, b_ref, bias_ref, scale_ref, shift_ref, o_ref, *, act, affine):
    acc = jnp.dot(a_ref[...], b_ref[...], preferred_element_type=jnp.float32)
    acc = acc + bias_ref[...]
    if act == "relu":
        acc = jnp.maximum(acc, 0.0)
    if affine:                                  # BN placed AFTER the ReLU (torch order)
        acc = acc * scale_ref[...] + shift_ref[...]
    o_ref[...] = acc


@functools.partial(jax.jit, static_argnames=("act", "affine", "tm", "tn"))
def _mm_call(a_p, w_p, b_p, s_p, t_p, *, act, affine, tm, tn):
    Mp, Kp = a_p.shape
    Np = w_p.shape[1]
    # grid = (N tiles, M tiles): M innermost so the weight tile is not re-DMA'd per step;
    # both axes "parallel" so v7x's two TensorCores both get work.
    grid = (Np // tn, Mp // tm)
    return pl.pallas_call(
        functools.partial(_mm_kernel, act=act, affine=affine),
        out_shape=jax.ShapeDtypeStruct((Mp, Np), jnp.float32),
        grid=grid,
        in_specs=[
            pl.BlockSpec((tm, Kp), lambda j, i: (i, 0)),
            pl.BlockSpec((Kp, tn), lambda j, i: (0, j)),
            pl.BlockSpec((1, tn), lambda j, i: (0, j)),
            pl.BlockSpec((1, tn), lambda j, i: (0, j)),
            pl.BlockSpec((1, tn), lambda j, i: (0, j)),
        ],
        out_specs=pl.BlockSpec((tm, tn), lambda j, i: (i, j)),
        compiler_params=pltpu.CompilerParams(
            dimension_semantics=("parallel", "parallel"),
            vmem_limit_bytes=_VMEM_LIMIT,
        ),
    )(a_p, w_p, b_p, s_p, t_p)


def dense(a, p):
    """a: (M, K) float.  Fused bf16 MXU matmul with bias / ReLU / BN-affine epilogue."""
    M, K = a.shape
    Kp, Np = p['w'].shape
    Mp, tm = _choose_m_tile(M)
    tn = 256 if (Np >= 256 and Np % 256 == 0) else Np
    a_p = jnp.pad(a.astype(jnp.bfloat16), ((0, Mp - M), (0, Kp - K)))
    out = _mm_call(a_p, p['w'], p['b'], p['scale'], p['shift'],
                   act=p['act'], affine=p['affine'], tm=tm, tn=tn)
    return out[:M, :p['n']]


# ----------------------------------------------------------------------------------
# conv layers (NHWC / (B, T, C) layouts, channel-last im2col -> fused matmul)
# ----------------------------------------------------------------------------------

def conv2d(x, p):
    """x: (N, H, W, Cin) NHWC.  Channel-last im2col (no transposes) + fused matmul."""
    # TODO(synk): the im2col window gather stays in XLA; a fully in-kernel shifted-matmul
    # conv would need strided Element BlockSpecs that Pallas-TPU cannot express cleanly
    # for the stride-2 windows here.
    N, H, W, Cin = x.shape
    kh, kw = p['ksize']
    sh, sw = p['stride']
    pad = p['pad']
    if pad:
        x = jnp.pad(x, ((0, 0), (pad, pad), (pad, pad), (0, 0)))
    Hp, Wp = H + 2 * pad, W + 2 * pad
    Hout = (Hp - kh) // sh + 1
    Wout = (Wp - kw) // sw + 1
    cols = []
    for dh in range(kh):
        for dw in range(kw):
            cols.append(x[:, dh:dh + sh * (Hout - 1) + 1:sh,
                          dw:dw + sw * (Wout - 1) + 1:sw, :])
    a = cols[0] if len(cols) == 1 else jnp.concatenate(cols, axis=-1)
    a = a.reshape(N * Hout * Wout, kh * kw * Cin)
    y = dense(a, p)
    return y.reshape(N, Hout, Wout, p['n'])


def conv1d_1x1(x, p):
    """x: (B, T, Cin) -> (B, T, Cout)."""
    B, T, C = x.shape
    return dense(x.reshape(B * T, C), p).reshape(B, T, p['n'])


def se_layer(x, p):
    """Squeeze-excite; FCs are tiny (M=10) -> keep them in plain XLA matmuls."""
    y = jnp.mean(x, axis=(1, 2))                                   # (B, C)
    y = jax.nn.relu(jnp.dot(y, p['fc1_wT']) + p['fc1_b'])
    y = jax.nn.sigmoid(jnp.dot(y, p['fc2_wT']) + p['fc2_b'])
    return x * y[:, None, None, :]


def se_basic_block(x, p):
    out = conv2d(x, p['conv1'])          # conv -> relu -> bn1   (fused epilogue)
    out = conv2d(out, p['conv2'])        # conv -> bn2           (folded into weights)
    out = se_layer(out, p['se'])
    residual = conv2d(x, p['ds']) if 'ds' in p else x
    return jax.nn.relu(out + residual)


# ----------------------------------------------------------------------------------
# audio front-end: preemphasis + fused (windowed DFT -> power -> mel) Pallas kernel
# ----------------------------------------------------------------------------------

SR, N_FFT, WIN, HOP, N_MELS, FMAX = 16000, 512, 400, 160, 64, 8000.0
_N_FREQ = N_FFT // 2 + 1          # 257
_FREQ_PAD = 384                   # 257 padded up (lane multiple of 128)
_MEL_PAD = 128                    # 64 padded up


def _hamming_periodic(n):
    i = np.arange(n)
    return 0.54 - 0.46 * np.cos(2.0 * np.pi * i / n)


def _mel_fbanks(n_freqs, f_min, f_max, n_mels, sr):
    all_freqs = np.linspace(0.0, sr / 2.0, n_freqs)
    hz2mel = lambda f: 2595.0 * np.log10(1.0 + f / 700.0)
    mel2hz = lambda m: 700.0 * (10.0 ** (m / 2595.0) - 1.0)
    m_pts = np.linspace(hz2mel(f_min), hz2mel(f_max), n_mels + 2)
    f_pts = mel2hz(m_pts)
    f_diff = f_pts[1:] - f_pts[:-1]
    slopes = f_pts[None, :] - all_freqs[:, None]
    down = -slopes[:, :-2] / f_diff[:-1]
    up = slopes[:, 2:] / f_diff[1:]
    return np.maximum(0.0, np.minimum(down, up))            # (n_freqs, n_mels)


def _build_frontend_consts():
    win = np.zeros(N_FFT, np.float64)
    off = (N_FFT - WIN) // 2
    win[off:off + WIN] = _hamming_periodic(WIN)              # win_length padded to n_fft
    n = np.arange(N_FFT)[:, None]
    k = np.arange(_N_FREQ)[None, :]
    ang = 2.0 * np.pi * n * k / N_FFT
    dft = np.zeros((N_FFT, 2 * _FREQ_PAD), np.float32)       # [win*cos | -win*sin], padded
    dft[:, :_N_FREQ] = win[:, None] * np.cos(ang)
    dft[:, _FREQ_PAD:_FREQ_PAD + _N_FREQ] = -win[:, None] * np.sin(ang)
    fb = np.zeros((_FREQ_PAD, _MEL_PAD), np.float32)
    fb[:_N_FREQ, :N_MELS] = _mel_fbanks(_N_FREQ, 0.0, FMAX, N_MELS, SR)
    return {'dft': jnp.asarray(dft, jnp.bfloat16), 'fb': jnp.asarray(fb, jnp.float32)}


def _melspec_kernel(fr_ref, dft_ref, fb_ref, o_ref):
    # windowed real DFT (bf16 in, f32 acc) -> power spectrum -> mel filterbank matmul
    spec = jnp.dot(fr_ref[...], dft_ref[...], preferred_element_type=jnp.float32)
    re = spec[:, :_FREQ_PAD]
    im = spec[:, _FREQ_PAD:]
    power = re * re + im * im
    o_ref[...] = jnp.dot(power, fb_ref[...], preferred_element_type=jnp.float32)


@functools.partial(jax.jit, static_argnames=("tm",))
def _melspec_call(frames_p, dft, fb, *, tm):
    Mp = frames_p.shape[0]
    return pl.pallas_call(
        _melspec_kernel,
        out_shape=jax.ShapeDtypeStruct((Mp, _MEL_PAD), jnp.float32),
        grid=(Mp // tm,),
        in_specs=[
            pl.BlockSpec((tm, N_FFT), lambda i: (i, 0)),
            pl.BlockSpec((N_FFT, 2 * _FREQ_PAD), lambda i: (0, 0)),
            pl.BlockSpec((_FREQ_PAD, _MEL_PAD), lambda i: (0, 0)),
        ],
        out_specs=pl.BlockSpec((tm, _MEL_PAD), lambda i: (i, 0)),
        compiler_params=pltpu.CompilerParams(
            dimension_semantics=("parallel",),
            vmem_limit_bytes=_VMEM_LIMIT,
        ),
    )(frames_p, dft, fb)


def preemphasis(x, coeff=0.97):
    padded = jnp.concatenate([x[:, 1:2], x], axis=1)          # reflect pad 1 on the left
    return padded[:, 1:] - coeff * padded[:, :-1]


def mel_spectrogram(x, consts):
    """x: (B, T_wav) waveform -> (B, n_frames, n_mels) mel power spectrogram."""
    B = x.shape[0]
    pad = N_FFT // 2
    xp = jnp.pad(x, ((0, 0), (pad, pad)), mode='reflect')     # center=True / reflect
    n_frames = 1 + (xp.shape[1] - N_FFT) // HOP
    idx = np.arange(n_frames)[:, None] * HOP + np.arange(N_FFT)[None, :]
    frames = xp[:, idx].reshape(B * n_frames, N_FFT)
    M = B * n_frames
    Mp, tm = _choose_m_tile(M)
    fr = jnp.pad(frames.astype(jnp.bfloat16), ((0, Mp - M), (0, 0)))
    mel = _melspec_call(fr, consts['dft'], consts['fb'], tm=tm)
    return mel[:M, :N_MELS].reshape(B, n_frames, N_MELS)      # (B, T, n_mels)


# ----------------------------------------------------------------------------------
# attentive statistics pooling kernel ((B, T, C): C=2048 lane-dense, f32 math)
# ----------------------------------------------------------------------------------

def _asp_kernel(x_ref, lg_ref, mu_ref, sg_ref):
    x = x_ref[...]                       # (B, T, C)
    lg = lg_ref[...]
    m = jnp.max(lg, axis=1, keepdims=True)
    e = jnp.exp(lg - m)
    w = e / jnp.sum(e, axis=1, keepdims=True)                 # softmax over time
    mu = jnp.sum(x * w, axis=1)                               # (B, C)
    ex2 = jnp.sum(x * x * w, axis=1)
    sg = jnp.sqrt(jnp.maximum(ex2 - mu * mu, 1e-5))
    mu_ref[...] = mu
    sg_ref[...] = sg


@jax.jit
def asp_pool(x, logits):
    B, T, C = x.shape
    mu, sg = pl.pallas_call(
        _asp_kernel,
        out_shape=(jax.ShapeDtypeStruct((B, C), jnp.float32),
                   jax.ShapeDtypeStruct((B, C), jnp.float32)),
        grid=(1,),
        in_specs=[pl.BlockSpec((B, T, C), lambda i: (0, 0, 0)),
                  pl.BlockSpec((B, T, C), lambda i: (0, 0, 0))],
        out_specs=(pl.BlockSpec((B, C), lambda i: (0, 0)),
                   pl.BlockSpec((B, C), lambda i: (0, 0))),
        compiler_params=pltpu.CompilerParams(
            dimension_semantics=("arbitrary",),
            vmem_limit_bytes=_VMEM_LIMIT,
        ),
    )(x.astype(jnp.float32), logits.astype(jnp.float32))
    return jnp.concatenate([mu, sg], axis=1)                  # (B, 2C)


# ----------------------------------------------------------------------------------
# remaining glue (plain XLA)
# ----------------------------------------------------------------------------------

def instance_norm_t(x, eps=1e-5):
    """x: (B, T, C_mel): normalize each (b, mel-bin) over time (InstanceNorm1d)."""
    mean = jnp.mean(x, axis=1, keepdims=True)
    var = jnp.mean((x - mean) ** 2, axis=1, keepdims=True)
    return (x - mean) / jnp.sqrt(var + eps)


def sv_audio_preprocess(wav):
    """SVAudioPreprocess: rms-norm to -27 dB then splice into 10 crops."""
    r = 10.0 ** (-27.0 / 20.0)
    a = jnp.sqrt(wav.shape[0] * r ** 2 / jnp.sum(wav ** 2))
    x = (wav * a).reshape(1, -1)
    num_frames = 250 * 160
    max_len = x.shape[1]
    if max_len < num_frames:
        num_frames = max_len
    offsets = np.linspace(0, max_len - num_frames, num=10)
    frames = [x[:, int(o): int(o) + num_frames] for o in offsets]
    return jnp.concatenate(frames, axis=0)                    # (10, num_frames)


# ----------------------------------------------------------------------------------
# parameters: raw torch-layout init, then one-time folding / re-layout / pre-pad / bf16
# ----------------------------------------------------------------------------------

def _init_bn(c):
    return (jnp.ones(c, jnp.float32), jnp.zeros(c, jnp.float32),
            jnp.zeros(c, jnp.float32), jnp.ones(c, jnp.float32))


def init_raw_params(key):
    keys = iter(jax.random.split(key, 256))

    def conv_w(cout, cin, kh, kw):                 # kaiming_normal, fan_out, relu
        std = np.sqrt(2.0 / (cout * kh * kw))
        return jax.random.normal(next(keys), (cout, cin, kh, kw), jnp.float32) * std

    def lin_w(cout, cin):
        bound = 1.0 / np.sqrt(cin)
        return jax.random.uniform(next(keys), (cout, cin), jnp.float32, -bound, bound)

    def lin_b(cout, cin):
        bound = 1.0 / np.sqrt(cin)
        return jax.random.uniform(next(keys), (cout,), jnp.float32, -bound, bound)

    def conv1d_w(cout, cin):
        bound = 1.0 / np.sqrt(cin)
        return jax.random.uniform(next(keys), (cout, cin, 1), jnp.float32, -bound, bound)

    p = {}
    p['conv1_w'] = conv_w(32, 1, 3, 3)
    p['conv1_b'] = jnp.zeros(32, jnp.float32)
    p['bn1'] = _init_bn(32)

    layers_cfg = [(32, 3, (1, 1)), (64, 4, (2, 2)), (128, 6, (2, 2)), (256, 3, (2, 2))]
    inplanes = 32
    all_layers = []
    for planes, nblocks, stride in layers_cfg:
        blocks = []
        for bi in range(nblocks):
            s = stride if bi == 0 else (1, 1)
            bp = {
                'stride': s,
                'conv1_w': conv_w(planes, inplanes, 3, 3), 'bn1': _init_bn(planes),
                'conv2_w': conv_w(planes, planes, 3, 3), 'bn2': _init_bn(planes),
                'se': {'fc1_w': lin_w(planes // 8, planes), 'fc1_b': lin_b(planes // 8, planes),
                       'fc2_w': lin_w(planes, planes // 8), 'fc2_b': lin_b(planes, planes // 8)},
            }
            if bi == 0 and (s != (1, 1) or inplanes != planes):
                bp['ds_conv_w'] = conv_w(planes, inplanes, 1, 1)
                bp['ds_bn'] = _init_bn(planes)
            blocks.append(bp)
            inplanes = planes
        all_layers.append(blocks)
    p['layers'] = all_layers

    att_ch = 256 * (64 // 8)                                  # 2048
    p['att_w1'] = conv1d_w(128, att_ch)
    p['att_b1'] = lin_b(128, att_ch)
    p['att_bn'] = _init_bn(128)
    p['att_w2'] = conv1d_w(att_ch, 128)
    p['att_b2'] = lin_b(att_ch, 128)
    p['fc_w'] = lin_w(512, att_ch * 2)
    p['fc_b'] = lin_b(512, att_ch * 2)
    return p


def _fold_bn(bn, eps=1e-5):
    g, b, m, v = bn
    scale = g / jnp.sqrt(v + eps)
    shift = b - m * scale
    return scale, shift


def _pad_wb(wk, bias, scale, shift, affine):
    """Pre-pad weight to (Kp, Np), pre-cast to bf16, pad bias/scale/shift to Np."""
    K, N = wk.shape
    Kp = _round_up(K, 128)
    Np = _round_up(N, 256) if N > 128 else 128        # multiple of 256 -> N tiles of 256
    w_p = jnp.zeros((Kp, Np), jnp.bfloat16).at[:K, :N].set(wk.astype(jnp.bfloat16))
    b_p = jnp.zeros((1, Np), jnp.float32).at[0, :N].set(bias.astype(jnp.float32))
    s_p = jnp.ones((1, Np), jnp.float32)
    t_p = jnp.zeros((1, Np), jnp.float32)
    if affine:
        s_p = s_p.at[0, :N].set(scale.astype(jnp.float32))
        t_p = t_p.at[0, :N].set(shift.astype(jnp.float32))
    return w_p, b_p, s_p, t_p, N


def _prep_dense(wk, bias, *, act="linear", bn_fold=None, bn_affine=None):
    """wk: (K, N) = (in_features, out_features), f32.  bn_fold: BN right after the conv
    (folded into the weights); bn_affine: BN after the ReLU (fused epilogue)."""
    wk = jnp.asarray(wk, jnp.float32)
    b = jnp.zeros((wk.shape[1],), jnp.float32) if bias is None else jnp.asarray(bias, jnp.float32)
    if bn_fold is not None:
        s, t = _fold_bn(bn_fold)
        wk = wk * s[None, :]
        b = b * s + t
    scale = shift = None
    affine = bn_affine is not None
    if affine:
        scale, shift = _fold_bn(bn_affine)
    w_p, b_p, s_p, t_p, N = _pad_wb(wk, b, scale, shift, affine)
    return dict(w=w_p, b=b_p, scale=s_p, shift=t_p, act=act, affine=affine, n=N)


def _prep_conv2d(w, bias, *, stride, pad, act="linear", bn_fold=None, bn_affine=None):
    """w: (Cout, Cin, kh, kw) torch layout -> channel-last im2col weight (kh*kw*Cin, Cout)."""
    Cout, Cin, kh, kw = w.shape
    wk = jnp.transpose(jnp.asarray(w, jnp.float32), (2, 3, 1, 0)).reshape(kh * kw * Cin, Cout)
    p = _prep_dense(wk, bias, act=act, bn_fold=bn_fold, bn_affine=bn_affine)
    p['ksize'] = (kh, kw)
    p['stride'] = stride
    p['pad'] = pad
    return p


def prepare_params(raw):
    att_ch = 2048
    # NHWC flatten order is h*256 + c while torch's (C,H) flatten is c*8 + h.
    idx = np.arange(att_ch)
    perm = (idx % 256) * 8 + idx // 256

    prep = {}
    prep['stem'] = _prep_conv2d(raw['conv1_w'], raw['conv1_b'], stride=(1, 1), pad=1,
                                act="relu", bn_affine=raw['bn1'])
    layers = []
    for blocks in raw['layers']:
        pblocks = []
        for bp in blocks:
            pb = {
                'conv1': _prep_conv2d(bp['conv1_w'], None, stride=bp['stride'], pad=1,
                                      act="relu", bn_affine=bp['bn1']),
                'conv2': _prep_conv2d(bp['conv2_w'], None, stride=(1, 1), pad=1,
                                      act="linear", bn_fold=bp['bn2']),
                'se': {'fc1_wT': bp['se']['fc1_w'].T, 'fc1_b': bp['se']['fc1_b'],
                       'fc2_wT': bp['se']['fc2_w'].T, 'fc2_b': bp['se']['fc2_b']},
            }
            if 'ds_conv_w' in bp:
                pb['ds'] = _prep_conv2d(bp['ds_conv_w'], None, stride=bp['stride'], pad=0,
                                        act="linear", bn_fold=bp['ds_bn'])
            pblocks.append(pb)
        layers.append(pblocks)
    prep['layers'] = layers

    w1 = raw['att_w1'][:, :, 0]                        # (128, 2048)
    prep['att1'] = _prep_dense(w1[:, perm].T, raw['att_b1'],
                               act="relu", bn_affine=raw['att_bn'])
    w2 = raw['att_w2'][:, :, 0]                        # (2048, 128)
    prep['att2'] = _prep_dense(w2[perm, :].T, raw['att_b2'][perm], act="linear")

    perm2 = np.concatenate([perm, perm + att_ch])
    prep['fc_wT'] = raw['fc_w'][:, perm2].T            # (4096, 512), f32, tiny-M -> XLA
    prep['fc_b'] = raw['fc_b']
    prep['frontend'] = _build_frontend_consts()
    return prep


# ----------------------------------------------------------------------------------
# forward pass (mirrors ResNetSpeakerEncoder.forward + SpeakerEncoder.forward)
# ----------------------------------------------------------------------------------

def resnet_speaker_encoder_forward(prep, x, l2_norm=True):
    # x: (B, T_wav) raw waveform crops (use_torch_spec=True)
    x = preemphasis(x, 0.97)
    mel = mel_spectrogram(x, prep['frontend'])                 # (B, T, 64)
    mel = jnp.log(mel + 1e-6)                                  # log_input=True
    mel = instance_norm_t(mel)
    x = jnp.transpose(mel, (0, 2, 1))[..., None]               # NHWC: (B, 64, T, 1)

    x = conv2d(x, prep['stem'])                                # conv -> relu -> bn1 fused
    for blocks in prep['layers']:
        for bp in blocks:
            x = se_basic_block(x, bp)

    B, H, W, C = x.shape                                       # (B, 8, T', 256)
    x = jnp.transpose(x, (0, 2, 1, 3)).reshape(B, W, H * C)    # (B, T', 2048) lane-dense

    h = conv1d_1x1(x, prep['att1'])                            # conv -> relu -> bn fused
    logits = conv1d_1x1(h, prep['att2'])

    pooled = asp_pool(x, logits)                               # (B, 4096) Pallas kernel
    out = jnp.dot(pooled, prep['fc_wT']) + prep['fc_b']        # (B, 512), tiny M -> XLA
    if l2_norm:
        out = out / jnp.maximum(jnp.linalg.norm(out, axis=1, keepdims=True), 1e-12)
    return out


def speaker_encoder_forward(prep, wav):
    crops = sv_audio_preprocess(wav)                           # (10, T_wav)
    emb = resnet_speaker_encoder_forward(prep, crops, l2_norm=True)
    return jnp.mean(emb, axis=0, keepdims=True)                # (1, 512)


# ----------------------------------------------------------------------------------

if __name__ == "__main__":
    key = jax.random.PRNGKey(0)
    # small waveform: 2560 samples (~0.16 s @ 16 kHz) -> 17 mel frames
    wav = jax.random.normal(key, (2560,), jnp.float32) * 0.1
    raw_params = init_raw_params(jax.random.PRNGKey(1))
    prep_params = prepare_params(raw_params)

    fwd = jax.jit(lambda w: speaker_encoder_forward(prep_params, w))
    out = jax.block_until_ready(fwd(wav))

    assert out.shape == (1, 512), out.shape
    assert bool(jnp.all(jnp.isfinite(out)))
    print("KERNEL_OK")
</pallas_src>

<mosaic_0001>
module attributes {stable_mosaic.version = 11 : i64} {
  func.func @_melspec_kernel(%arg0: i32, %arg1: memref<176x512xbf16, #tpu.memory_space<vmem>>, %arg2: memref<512x768xbf16, #tpu.memory_space<vmem>>, %arg3: memref<384x128xf32, #tpu.memory_space<vmem>>, %arg4: memref<176x128xf32, #tpu.memory_space<vmem>>) attributes {dimension_semantics = [#tpu.dimension_semantics<parallel>], iteration_bounds = array<i64: 1>, scalar_prefetch = 0 : i64, scratch_operands = 0 : i64, tpu.core_type = #tpu.core_type<tc>, window_params = [{transform_indices = @transform_0, window_bounds = array<i64: 176, 512>}, {pipeline_mode = #tpu.pipeline_mode<synchronous>, transform_indices = @transform_1, window_bounds = array<i64: 512, 768>}, {pipeline_mode = #tpu.pipeline_mode<synchronous>, transform_indices = @transform_2, window_bounds = array<i64: 384, 128>}, {transform_indices = @transform_3, window_bounds = array<i64: 176, 128>}]} {
    %c0 = arith.constant 0 : index
    %c0_0 = arith.constant 0 : index
    %0 = vector.load %arg1[%c0, %c0_0] : memref<176x512xbf16, #tpu.memory_space<vmem>>, vector<176x512xbf16>
    %c0_1 = arith.constant 0 : index
    %c0_2 = arith.constant 0 : index
    %1 = vector.load %arg2[%c0_1, %c0_2] : memref<512x768xbf16, #tpu.memory_space<vmem>>, vector<512x768xbf16>
    %cst = arith.constant dense<0.000000e+00> : vector<176x768xf32>
    %2 = tpu.matmul %0, %1, %cst {dimension_numbers = #tpu.dot_dimension_numbers<[1], [0], [0], [1], [0, 0, 1, 1], [], []>} : vector<176x512xbf16>, vector<512x768xbf16>, vector<176x768xf32> -> vector<176x768xf32>
    %3 = vector.extract_strided_slice %2 {offsets = [0, 0], sizes = [176, 384], strides = [1, 1]} : vector<176x768xf32> to vector<176x384xf32>
    %4 = vector.extract_strided_slice %2 {offsets = [0, 384], sizes = [176, 384], strides = [1, 1]} : vector<176x768xf32> to vector<176x384xf32>
    %5 = arith.mulf %3, %3 : vector<176x384xf32>
    %6 = arith.mulf %4, %4 : vector<176x384xf32>
    %7 = arith.addf %5, %6 : vector<176x384xf32>
    %c0_3 = arith.constant 0 : index
    %c0_4 = arith.constant 0 : index
    %8 = vector.load %arg3[%c0_3, %c0_4] : memref<384x128xf32, #tpu.memory_space<vmem>>, vector<384x128xf32>
    %cst_5 = arith.constant dense<0.000000e+00> : vector<176x128xf32>
    %9 = tpu.matmul %7, %8, %cst_5 {dimension_numbers = #tpu.dot_dimension_numbers<[1], [0], [0], [1], [0, 0, 1, 1], [], []>} : vector<176x384xf32>, vector<384x128xf32>, vector<176x128xf32> -> vector<176x128xf32>
    %c0_6 = arith.constant 0 : index
    %c0_7 = arith.constant 0 : index
    %10 = vector.load %arg4[%c0_6, %c0_7] : memref<176x128xf32, #tpu.memory_space<vmem>>, vector<176x128xf32>
    tpu.vector_store %arg4[%c0_6, %c0_7], %9 {strides = array<i32>} : memref<176x128xf32, #tpu.memory_space<vmem>>, vector<176x128xf32>,
    return
  }
  func.func @transform_0(%arg0: i32) -> (i32, i32) {
    %c0_i32 = arith.constant 0 : i32
    %c0_i32_0 = arith.constant 0 : i32
    return %arg0, %c0_i32 : i32, i32
  }
  func.func @transform_1(%arg0: i32) -> (i32, i32) {
    %c0_i32 = arith.constant 0 : i32
    %c0_i32_0 = arith.constant 0 : i32
    %c0_i32_1 = arith.constant 0 : i32
    return %c0_i32, %c0_i32_0 : i32, i32
  }
  func.func @transform_2(%arg0: i32) -> (i32, i32) {
    %c0_i32 = arith.constant 0 : i32
    %c0_i32_0 = arith.constant 0 : i32
    %c0_i32_1 = arith.constant 0 : i32
    return %c0_i32, %c0_i32_0 : i32, i32
  }
  func.func @transform_3(%arg0: i32) -> (i32, i32) {
    %c0_i32 = arith.constant 0 : i32
    %c0_i32_0 = arith.constant 0 : i32
    return %arg0, %c0_i32 : i32, i32
  }
}

</mosaic_0001>

<llo_original>
// kernel: _melspec_call.1
$region0: #{_melspec_call.1}
  #allocation0 [shape = 'u32[]', space=smem, size = 0x4, offset = 0x4, fixed_abs, tag = 'smem constant byte address 0x4 - core index']
  #allocation1 [shape = 'u32[144,128]{1,0:T(1,128)}', space=vmem, size = 0x12000, scoped, tag = 'internal scratch']
  %s0 = inlined_call_operand.hbm [shape: bf16[176,512], index: 0, kind: input, shape index: {}]
  %s1 = inlined_call_operand.hbm [shape: bf16[512,768], index: 1, kind: input, shape index: {}]
  %s2 = inlined_call_operand.hbm [shape: f32[384,128], index: 2, kind: input, shape index: {}]
  %s3 = inlined_call_operand.hbm [shape: f32[176,128], index: 3, kind: output, shape index: {}]
  %s4 = sld [smem:[#allocation0]]
  $region34: #{_melspec_call.1} parent=0
    _
  %s6 = ssub.s32 1, %s4
  %s7 = scalar_select 0, %s6, %s4
  $region1: #{_melspec_call.1} parent=0
    #allocation2 [shape = 'u8[180224]{0}', space=vmem, size = 0x2c000, scoped, tag = 'input window, operand 0, single buffered']
    #allocation3 [shape = 's32[1]{0}', space=sflag, size = 0x4, scoped, tag = 'scoped memory for _melspec_call.1']
    #allocation4 [shape = 's32[1]{0}', space=sflag, size = 0x4, scoped, tag = 'scoped memory for _melspec_call.1']
    #allocation5 [shape = 'u8[786432]{0}', space=vmem, size = 0xc0000, scoped, tag = 'input window, operand 1, single buffered']
    #allocation6 [shape = 's32[1]{0}', space=sflag, size = 0x4, scoped, tag = 'scoped memory for _melspec_call.1']
    #allocation7 [shape = 'u8[196608]{0}', space=vmem, size = 0x30000, scoped, tag = 'input window, operand 2, single buffered']
    #allocation8 [shape = 'u8[90112]{0}', space=vmem, size = 0x16000, scoped, tag = 'output window, operand 0, single buffered']
    %8 = vsyncpa [#allocation3], 0
    %9 = vsyncpa [#allocation6], 0
    %10 = vsyncpa [#allocation4], 0
    // Predicated region
    $region2: #{_melspec_call.1} parent=1 // pred_check
      _
    $region3: #{_melspec_call.1} parent=1 // pred_check_branch
      %12 = sbr.rel (0) target = $region5
    $region4: #{_melspec_call.1} parent=1 // pred_region
      %s14 = ssub.s32 5632, 5632
      %15 = vsyncadd [#allocation3], %s14
      %s16 = sshll.u32 [#allocation2], 4
      %s17 = int_to_ptr.vmem [resolvable:$true] %s16
      %22 = dma.hbm_to_vmem [thread:$0]  %s0, 5632, %s17, [#allocation3], 256, 256, 16
    $region5: #{_melspec_call.1} parent=1 // pred_fallthru
      _
    // Predicated region
    $region6: #{_melspec_call.1} parent=1 // pred_check
      _
    $region7: #{_melspec_call.1} parent=1 // pred_check_branch
      %24 = sbr.rel (0) target = $region9
    $region8: #{_melspec_call.1} parent=1 // pred_region
      %s26 = ssub.s32 24576, 24576
      %27 = vsyncadd [#allocation6], %s26
      %s28 = sshll.u32 [#allocation5], 4
      %s29 = int_to_ptr.vmem [resolvable:$true] %s28
      %34 = dma.hbm_to_vmem [thread:$0]  %s1, 24576, %s29, [#allocation6], 384, 384, 24
    $region9: #{_melspec_call.1} parent=1 // pred_fallthru
      _
    // Predicated region
    $region10: #{_melspec_call.1} parent=1 // pred_check
      _
    $region11: #{_melspec_call.1} parent=1 // pred_check_branch
      %36 = sbr.rel (0) target = $region13
    $region12: #{_melspec_call.1} parent=1 // pred_region
      %s38 = ssub.s32 6144, 6144
      %39 = vsyncadd [#allocation6], %s38
      %s40 = sshll.u32 [#allocation7], 4
      %s41 = int_to_ptr.vmem [resolvable:$true] %s40
      %46 = dma.hbm_to_vmem [thread:$0]  %s2, 6144, %s41, [#allocation6], 128, 128, 8
    $region13: #{_melspec_call.1} parent=1 // pred_fallthru
      _
    // Predicated region
    $region14: #{_melspec_call.1} parent=1 // pred_check
      _
    $region15: #{_melspec_call.1} parent=1 // pred_check_branch
      %48 = sbr.rel (0) target = $region17
    $region16: #{_melspec_call.1} parent=1 // pred_region
      %49 = dma.done [#allocation3], 5632
    $region17: #{_melspec_call.1} parent=1 // pred_fallthru
      _
    // Predicated region
    $region18: #{_melspec_call.1} parent=1 // pred_check
      _
    $region19: #{_melspec_call.1} parent=1 // pred_check_branch
      %51 = sbr.rel (0) target = $region21
    $region20: #{_melspec_call.1} parent=1 // pred_region
      %52 = dma.done [#allocation6], 24576
    $region21: #{_melspec_call.1} parent=1 // pred_fallthru
      _
    // Predicated region
    $region22: #{_melspec_call.1} parent=1 // pred_check
      _
    $region23: #{_melspec_call.1} parent=1 // pred_check_branch
      %54 = sbr.rel (0) target = $region25
    $region24: #{_melspec_call.1} parent=1 // pred_region
      %55 = dma.done [#allocation6], 6144
    $region25: #{_melspec_call.1} parent=1 // pred_fallthru
      _
    %v56 = vld [vmem:[#allocation2] sm:$0xff]
    %v57 = vld [vmem:[#allocation2 + $0x8] sm:$0xff]
    %v58 = vld [vmem:[#allocation2 + $0x10] sm:$0xff]
    %v59 = vld [vmem:[#allocation2 + $0x18] sm:$0xff]
    %v60 = vld [vmem:[#allocation2 + $0x20] sm:$0xff]
    %v61 = vld [vmem:[#allocation2 + $0x28] sm:$0xff]
    %v62 = vld [vmem:[#allocation2 + $0x30] sm:$0xff]
    %v63 = vld [vmem:[#allocation2 + $0x38] sm:$0xff]
    %v64 = vld [vmem:[#allocation2 + $0x40] sm:$0xff]
    %v65 = vld [vmem:[#allocation2 + $0x48] sm:$0xff]
    %v66 = vld [vmem:[#allocation2 + $0x50] sm:$0xff]
    %v67 = vld [vmem:[#allocation2 + $0x58] sm:$0xff]
    %v68 = vld [vmem:[#allocation2 + $0x60] sm:$0xff]
    %v69 = vld [vmem:[#allocation2 + $0x68] sm:$0xff]
    %v70 = vld [vmem:[#allocation2 + $0x70] sm:$0xff]
    %v71 = vld [vmem:[#allocation2 + $0x78] sm:$0xff]
    %v72 = vld [vmem:[#allocation2 + $0x80] sm:$0xff]
    %v73 = vld [vmem:[#allocation2 + $0x88] sm:$0xff]
    %v74 = vld [vmem:[#allocation2 + $0x90] sm:$0xff]
    %v75 = vld [vmem:[#allocation2 + $0x98] sm:$0xff]
    %v76 = vld [vmem:[#allocation2 + $0xa0] sm:$0xff]
    %v77 = vld [vmem:[#allocation2 + $0xa8] sm:$0xff]
    %v78 = vld [vmem:[#allocation2 + $0xb0] sm:$0xff]
    %v79 = vld [vmem:[#allocation2 + $0xb8] sm:$0xff]
    %v80 = vld [vmem:[#allocation2 + $0xc0] sm:$0xff]
    %v81 = vld [vmem:[#allocation2 + $0xc8] sm:$0xff]
    %v82 = vld [vmem:[#allocation2 + $0xd0] sm:$0xff]
    %v83 = vld [vmem:[#allocation2 + $0xd8] sm:$0xff]
    %v84 = vld [vmem:[#allocation2 + $0xe0] sm:$0xff]
    %v85 = vld [vmem:[#allocation2 + $0xe8] sm:$0xff]
    %v86 = vld [vmem:[#allocation2 + $0xf0] sm:$0xff]
    %v87 = vld [vmem:[#allocation2 + $0xf8] sm:$0xff]
    %v88 = vld [vmem:[#allocation2 + $0x100] sm:$0xff]
    %v89 = vld [vmem:[#allocation2 + $0x108] sm:$0xff]
    %v90 = vld [vmem:[#allocation2 + $0x110] sm:$0xff]
    %v91 = vld [vmem:[#allocation2 + $0x118] sm:$0xff]
    %v92 = vld [vmem:[#allocation2 + $0x120] sm:$0xff]
    %v93 = vld [vmem:[#allocation2 + $0x128] sm:$0xff]
    %v94 = vld [vmem:[#allocation2 + $0x130] sm:$0xff]
    %v95 = vld [vmem:[#allocation2 + $0x138] sm:$0xff]
    %v96 = vld [vmem:[#allocation2 + $0x140] sm:$0xff]
    %v97 = vld [vmem:[#allocation2 + $0x148] sm:$0xff]
    %v98 = vld [vmem:[#allocation2 + $0x150] sm:$0xff]
    %v99 = vld [vmem:[#allocation2 + $0x158] sm:$0xff]
    %v100 = vld [vmem:[#allocation5] sm:$0xff]
    %v101 = vld [vmem:[#allocation5 + $0x8] sm:$0xff]
    %v102 = vld [vmem:[#allocation5 + $0x10] sm:$0xff]
    %v103 = vld [vmem:[#allocation5 + $0x18] sm:$0xff]
    %v104 = vld [vmem:[#allocation5 + $0x20] sm:$0xff]
    %v105 = vld [vmem:[#allocation5 + $0x28] sm:$0xff]
    %v106 = vld [vmem:[#allocation5 + $0x30] sm:$0xff]
    %v107 = vld [vmem:[#allocation5 + $0x38] sm:$0xff]
    %v108 = vld [vmem:[#allocation5 + $0x40] sm:$0xff]
    %v109 = vld [vmem:[#allocation5 + $0x48] sm:$0xff]
    %v110 = vld [vmem:[#allocation5 + $0x50] sm:$0xff]
    %v111 = vld [vmem:[#allocation5 + $0x58] sm:$0xff]
    %v112 = vld [vmem:[#allocation5 + $0x60] sm:$0xff]
    %v113 = vld [vmem:[#allocation5 + $0x68] sm:$0xff]
    %v114 = vld [vmem:[#allocation5 + $0x70] sm:$0xff]
    %v115 = vld [vmem:[#allocation5 + $0x78] sm:$0xff]
    %v116 = vld [vmem:[#allocation5 + $0x80] sm:$0xff]
    %v117 = vld [vmem:[#allocation5 + $0x88] sm:$0xff]
    %v118 = vld [vmem:[#allocation5 + $0x90] sm:$0xff]
    %v119 = vld [vmem:[#allocation5 + $0x98] sm:$0xff]
    %v120 = vld [vmem:[#allocation5 + $0xa0] sm:$0xff]
    %v121 = vld [vmem:[#allocation5 + $0xa8] sm:$0xff]
    %v122 = vld [vmem:[#allocation5 + $0xb0] sm:$0xff]
    %v123 = vld [vmem:[#allocation5 + $0xb8] sm:$0xff]
    %v124 = vld [vmem:[#allocation5 + $0xc0] sm:$0xff]
    %v125 = vld [vmem:[#allocation5 + $0xc8] sm:$0xff]
    %v126 = vld [vmem:[#allocation5 + $0xd0] sm:$0xff]
    %v127 = vld [vmem:[#allocation5 + $0xd8] sm:$0xff]
    %v128 = vld [vmem:[#allocation5 + $0xe0] sm:$0xff]
    %v129 = vld [vmem:[#allocation5 + $0xe8] sm:$0xff]
    %v130 = vld [vmem:[#allocation5 + $0xf0] sm:$0xff]
    %v131 = vld [vmem:[#allocation5 + $0xf8] sm:$0xff]
    %v132 = vld [vmem:[#allocation5 + $0x100] sm:$0xff]
    %v133 = vld [vmem:[#allocation5 + $0x108] sm:$0xff]
    %v134 = vld [vmem:[#allocation5 + $0x110] sm:$0xff]
    %v135 = vld [vmem:[#allocation5 + $0x118] sm:$0xff]
    %v136 = vld [vmem:[#allocation5 + $0x120] sm:$0xff]
    %v137 = vld [vmem:[#allocation5 + $0x128] sm:$0xff]
    %v138 = vld [vmem:[#allocation5 + $0x130] sm:$0xff]
    %v139 = vld [vmem:[#allocation5 + $0x138] sm:$0xff]
    %v140 = vld [vmem:[#allocation5 + $0x140] sm:$0xff]
    %v141 = vld [vmem:[#allocation5 + $0x148] sm:$0xff]
    %v142 = vld [vmem:[#allocation5 + $0x150] sm:$0xff]
    %v143 = vld [vmem:[#allocation5 + $0x158] sm:$0xff]
    %v144 = vld [vmem:[#allocation5 + $0x160] sm:$0xff]
    %v145 = vld [vmem:[#allocation5 + $0x168] sm:$0xff]
    %v146 = vld [vmem:[#allocation5 + $0x170] sm:$0xff]
    %v147 = vld [vmem:[#allocation5 + $0x178] sm:$0xff]
    %v148 = vld [vmem:[#allocation5 + $0x180] sm:$0xff]
    %v149 = vld [vmem:[#allocation5 + $0x188] sm:$0xff]
    %v150 = vld [vmem:[#allocation5 + $0x190] sm:$0xff]
    %v151 = vld [vmem:[#allocation5 + $0x198] sm:$0xff]
    %v152 = vld [vmem:[#allocation5 + $0x1a0] sm:$0xff]
    %v153 = vld [vmem:[#allocation5 + $0x1a8] sm:$0xff]
    %v154 = vld [vmem:[#allocation5 + $0x1b0] sm:$0xff]
    %v155 = vld [vmem:[#allocation5 + $0x1b8] sm:$0xff]
    %v156 = vld [vmem:[#allocation5 + $0x1c0] sm:$0xff]
    %v157 = vld [vmem:[#allocation5 + $0x1c8] sm:$0xff]
    %v158 = vld [vmem:[#allocation5 + $0x1d0] sm:$0xff]
    %v159 = vld [vmem:[#allocation5 + $0x1d8] sm:$0xff]
    %v160 = vld [vmem:[#allocation5 + $0x1e0] sm:$0xff]
    %v161 = vld [vmem:[#allocation5 + $0x1e8] sm:$0xff]
    %v162 = vld [vmem:[#allocation5 + $0x1f0] sm:$0xff]
    %v163 = vld [vmem:[#allocation5 + $0x1f8] sm:$0xff]
    %v164 = vld [vmem:[#allocation5 + $0x200] sm:$0xff]
    %v165 = vld [vmem:[#allocation5 + $0x208] sm:$0xff]
    %v166 = vld [vmem:[#allocation5 + $0x210] sm:$0xff]
    %v167 = vld [vmem:[#allocation5 + $0x218] sm:$0xff]
    %v168 = vld [vmem:[#allocation5 + $0x220] sm:$0xff]
    %v169 = vld [vmem:[#allocation5 + $0x228] sm:$0xff]
    %v170 = vld [vmem:[#allocation5 + $0x230] sm:$0xff]
    %v171 = vld [vmem:[#allocation5 + $0x238] sm:$0xff]
    %v172 = vld [vmem:[#allocation5 + $0x240] sm:$0xff]
    %v173 = vld [vmem:[#allocation5 + $0x248] sm:$0xff]
    %v174 = vld [vmem:[#allocation5 + $0x250] sm:$0xff]
    %v175 = vld [vmem:[#allocation5 + $0x258] sm:$0xff]
    %v176 = vld [vmem:[#allocation5 + $0x260] sm:$0xff]
    %v177 = vld [vmem:[#allocation5 + $0x268] sm:$0xff]
    %v178 = vld [vmem:[#allocation5 + $0x270] sm:$0xff]
    %v179 = vld [vmem:[#allocation5 + $0x278] sm:$0xff]
    %v180 = vld [vmem:[#allocation5 + $0x280] sm:$0xff]
    %v181 = vld [vmem:[#allocation5 + $0x288] sm:$0xff]
    %v182 = vld [vmem:[#allocation5 + $0x290] sm:$0xff]
    %v183 = vld [vmem:[#allocation5 + $0x298] sm:$0xff]
    %v184 = vld [vmem:[#allocation5 + $0x2a0] sm:$0xff]
    %v185 = vld [vmem:[#allocation5 + $0x2a8] sm:$0xff]
    %v186 = vld [vmem:[#allocation5 + $0x2b0] sm:$0xff]
    %v187 = vld [vmem:[#allocation5 + $0x2b8] sm:$0xff]
    %v188 = vld [vmem:[#allocation5 + $0x2c0] sm:$0xff]
    %v189 = vld [vmem:[#allocation5 + $0x2c8] sm:$0xff]
    %v190 = vld [vmem:[#allocation5 + $0x2d0] sm:$0xff]
    %v191 = vld [vmem:[#allocation5 + $0x2d8] sm:$0xff]
    %v192 = vld [vmem:[#allocation5 + $0x2e0] sm:$0xff]
    %v193 = vld [vmem:[#allocation5 + $0x2e8] sm:$0xff]
    %v194 = vld [vmem:[#allocation5 + $0x2f0] sm:$0xff]
    %v195 = vld [vmem:[#allocation5 + $0x2f8] sm:$0xff]
    %v196 = vld [vmem:[#allocation5 + $0x300] sm:$0xff]
    %v197 = vld [vmem:[#allocation5 + $0x308] sm:$0xff]
    %v198 = vld [vmem:[#allocation5 + $0x310] sm:$0xff]
    %v199 = vld [vmem:[#allocation5 + $0x318] sm:$0xff]
    %v200 = vld [vmem:[#allocation5 + $0x320] sm:$0xff]
    %v201 = vld [vmem:[#allocation5 + $0x328] sm:$0xff]
    %v202 = vld [vmem:[#allocation5 + $0x330] sm:$0xff]
    %v203 = vld [vmem:[#allocation5 + $0x338] sm:$0xff]
    %v204 = vld [vmem:[#allocation5 + $0x340] sm:$0xff]
    %v205 = vld [vmem:[#allocation5 + $0x348] sm:$0xff]
    %v206 = vld [vmem:[#allocation5 + $0x350] sm:$0xff]
    %v207 = vld [vmem:[#allocation5 + $0x358] sm:$0xff]
    %v208 = vld [vmem:[#allocation5 + $0x360] sm:$0xff]
    %v209 = vld [vmem:[#allocation5 + $0x368] sm:$0xff]
    %v210 = vld [vmem:[#allocation5 + $0x370] sm:$0xff]
    %v211 = vld [vmem:[#allocation5 + $0x378] sm:$0xff]
    %v212 = vld [vmem:[#allocation5 + $0x380] sm:$0xff]
    %v213 = vld [vmem:[#allocation5 + $0x388] sm:$0xff]
    %v214 = vld [vmem:[#allocation5 + $0x390] sm:$0xff]
    %v215 = vld [vmem:[#allocation5 + $0x398] sm:$0xff]
    %v216 = vld [vmem:[#allocation5 + $0x3a0] sm:$0xff]
    %v217 = vld [vmem:[#allocation5 + $0x3a8] sm:$0xff]
    %v218 = vld [vmem:[#allocation5 + $0x3b0] sm:$0xff]
    %v219 = vld [vmem:[#allocation5 + $0x3b8] sm:$0xff]
    %v220 = vld [vmem:[#allocation5 + $0x3c0] sm:$0xff]
    %v221 = vld [vmem:[#allocation5 + $0x3c8] sm:$0xff]
    %v222 = vld [vmem:[#allocation5 + $0x3d0] sm:$0xff]
    %v223 = vld [vmem:[#allocation5 + $0x3d8] sm:$0xff]
    %v224 = vld [vmem:[#allocation5 + $0x3e0] sm:$0xff]
    %v225 = vld [vmem:[#allocation5 + $0x3e8] sm:$0xff]
    %v226 = vld [vmem:[#allocation5 + $0x3f0] sm:$0xff]
    %v227 = vld [vmem:[#allocation5 + $0x3f8] sm:$0xff]
    %v228 = vld [vmem:[#allocation5 + $0x400] sm:$0xff]
    %v229 = vld [vmem:[#allocation5 + $0x408] sm:$0xff]
    %v230 = vld [vmem:[#allocation5 + $0x410] sm:$0xff]
    %v231 = vld [vmem:[#allocation5 + $0x418] sm:$0xff]
    %v232 = vld [vmem:[#allocation5 + $0x420] sm:$0xff]
    %v233 = vld [vmem:[#allocation5 + $0x428] sm:$0xff]
    %v234 = vld [vmem:[#allocation5 + $0x430] sm:$0xff]
    %v235 = vld [vmem:[#allocation5 + $0x438] sm:$0xff]
    %v236 = vld [vmem:[#allocation5 + $0x440] sm:$0xff]
    %v237 = vld [vmem:[#allocation5 + $0x448] sm:$0xff]
    %v238 = vld [vmem:[#allocation5 + $0x450] sm:$0xff]
    %v239 = vld [vmem:[#allocation5 + $0x458] sm:$0xff]
    %v240 = vld [vmem:[#allocation5 + $0x460] sm:$0xff]
    %v241 = vld [vmem:[#allocation5 + $0x468] sm:$0xff]
    %v242 = vld [vmem:[#allocation5 + $0x470] sm:$0xff]
    %v243 = vld [vmem:[#allocation5 + $0x478] sm:$0xff]
    %v244 = vld [vmem:[#allocation5 + $0x480] sm:$0xff]
    %v245 = vld [vmem:[#allocation5 + $0x488] sm:$0xff]
    %v246 = vld [vmem:[#allocation5 + $0x490] sm:$0xff]
    %v247 = vld [vmem:[#allocation5 + $0x498] sm:$0xff]
    %v248 = vld [vmem:[#allocation5 + $0x4a0] sm:$0xff]
    %v249 = vld [vmem:[#allocation5 + $0x4a8] sm:$0xff]
    %v250 = vld [vmem:[#allocation5 + $0x4b0] sm:$0xff]
    %v251 = vld [vmem:[#allocation5 + $0x4b8] sm:$0xff]
    %v252 = vld [vmem:[#allocation5 + $0x4c0] sm:$0xff]
    %v253 = vld [vmem:[#allocation5 + $0x4c8] sm:$0xff]
    %v254 = vld [vmem:[#allocation5 + $0x4d0] sm:$0xff]
    %v255 = vld [vmem:[#allocation5 + $0x4d8] sm:$0xff]
    %v256 = vld [vmem:[#allocation5 + $0x4e0] sm:$0xff]
    %v257 = vld [vmem:[#allocation5 + $0x4e8] sm:$0xff]
    %v258 = vld [vmem:[#allocation5 + $0x4f0] sm:$0xff]
    %v259 = vld [vmem:[#allocation5 + $0x4f8] sm:$0xff]
    %v260 = vld [vmem:[#allocation5 + $0x500] sm:$0xff]
    %v261 = vld [vmem:[#allocation5 + $0x508] sm:$0xff]
    %v262 = vld [vmem:[#allocation5 + $0x510] sm:$0xff]
    %v263 = vld [vmem:[#allocation5 + $0x518] sm:$0xff]
    %v264 = vld [vmem:[#allocation5 + $0x520] sm:$0xff]
    %v265 = vld [vmem:[#allocation5 + $0x528] sm:$0xff]
    %v266 = vld [vmem:[#allocation5 + $0x530] sm:$0xff]
    %v267 = vld [vmem:[#allocation5 + $0x538] sm:$0xff]
    %v268 = vld [vmem:[#allocation5 + $0x540] sm:$0xff]
    %v269 = vld [vmem:[#allocation5 + $0x548] sm:$0xff]
    %v270 = vld [vmem:[#allocation5 + $0x550] sm:$0xff]
    %v271 = vld [vmem:[#allocation5 + $0x558] sm:$0xff]
    %v272 = vld [vmem:[#allocation5 + $0x560] sm:$0xff]
    %v273 = vld [vmem:[#allocation5 + $0x568] sm:$0xff]
    %v274 = vld [vmem:[#allocation5 + $0x570] sm:$0xff]
    %v275 = vld [vmem:[#allocation5 + $0x578] sm:$0xff]
    %v276 = vld [vmem:[#allocation5 + $0x580] sm:$0xff]
    %v277 = vld [vmem:[#allocation5 + $0x588] sm:$0xff]
    %v278 = vld [vmem:[#allocation5 + $0x590] sm:$0xff]
    %v279 = vld [vmem:[#allocation5 + $0x598] sm:$0xff]
    %v280 = vld [vmem:[#allocation5 + $0x5a0] sm:$0xff]
    %v281 = vld [vmem:[#allocation5 + $0x5a8] sm:$0xff]
    %v282 = vld [vmem:[#allocation5 + $0x5b0] sm:$0xff]
    %v283 = vld [vmem:[#allocation5 + $0x5b8] sm:$0xff]
    %v284 = vld [vmem:[#allocation5 + $0x5c0] sm:$0xff]
    %v285 = vld [vmem:[#allocation5 + $0x5c8] sm:$0xff]
    %v286 = vld [vmem:[#allocation5 + $0x5d0] sm:$0xff]
    %v287 = vld [vmem:[#allocation5 + $0x5d8] sm:$0xff]
    %v288 = vld [vmem:[#allocation5 + $0x5e0] sm:$0xff]
    %v289 = vld [vmem:[#allocation5 + $0x5e8] sm:$0xff]
    %v290 = vld [vmem:[#allocation5 + $0x5f0] sm:$0xff]
    %v291 = vld [vmem:[#allocation5 + $0x5f8] sm:$0xff]
    %v336 = vunpack.c.l.b16 %v56
    %v337 = vunpack.c.h.b16 %v56
    %v338 = vunpack.c.l.b16 %v57
    %v339 = vunpack.c.h.b16 %v57
    %v340 = vunpack.c.l.b16 %v58
    %v341 = vunpack.c.h.b16 %v58
    %v342 = vunpack.c.l.b16 %v59
    %v343 = vunpack.c.h.b16 %v59
    %v344 = vunpack.c.l.b16 %v60
    %v345 = vunpack.c.h.b16 %v60
    %v346 = vunpack.c.l.b16 %v61
    %v347 = vunpack.c.h.b16 %v61
    %v348 = vunpack.c.l.b16 %v62
    %v349 = vunpack.c.h.b16 %v62
    %v350 = vunpack.c.l.b16 %v63
    %v351 = vunpack.c.h.b16 %v63
    %v352 = vunpack.c.l.b16 %v64
    %v353 = vunpack.c.h.b16 %v64
    %v354 = vunpack.c.l.b16 %v65
    %v355 = vunpack.c.h.b16 %v65
    %v356 = vunpack.c.l.b16 %v66
    %v357 = vunpack.c.h.b16 %v66
    %v358 = vunpack.c.l.b16 %v67
    %v359 = vunpack.c.h.b16 %v67
    %v360 = vunpack.c.l.b16 %v68
    %v361 = vunpack.c.h.b16 %v68
    %v362 = vunpack.c.l.b16 %v69
    %v363 = vunpack.c.h.b16 %v69
    %v364 = vunpack.c.l.b16 %v70
    %v365 = vunpack.c.h.b16 %v70
    %v366 = vunpack.c.l.b16 %v71
    %v367 = vunpack.c.h.b16 %v71
    %v368 = vunpack.c.l.b16 %v72
    %v369 = vunpack.c.h.b16 %v72
    %v370 = vunpack.c.l.b16 %v73
    %v371 = vunpack.c.h.b16 %v73
    %v372 = vunpack.c.l.b16 %v74
    %v373 = vunpack.c.h.b16 %v74
    %v374 = vunpack.c.l.b16 %v75
    %v375 = vunpack.c.h.b16 %v75
    %v376 = vunpack.c.l.b16 %v76
    %v377 = vunpack.c.h.b16 %v76
    %v378 = vunpack.c.l.b16 %v77
    %v379 = vunpack.c.h.b16 %v77
    %v380 = vunpack.c.l.b16 %v78
    %v381 = vunpack.c.h.b16 %v78
    %v382 = vunpack.c.l.b16 %v79
    %v383 = vunpack.c.h.b16 %v79
    %v384 = vunpack.c.l.b16 %v80
    %v385 = vunpack.c.h.b16 %v80
    %v386 = vunpack.c.l.b16 %v81
    %v387 = vunpack.c.h.b16 %v81
    %v388 = vunpack.c.l.b16 %v82
    %v389 = vunpack.c.h.b16 %v82
    %v390 = vunpack.c.l.b16 %v83
    %v391 = vunpack.c.h.b16 %v83
    %v392 = vunpack.c.l.b16 %v84
    %v393 = vunpack.c.h.b16 %v84
    %v394 = vunpack.c.l.b16 %v85
    %v395 = vunpack.c.h.b16 %v85
    %v396 = vunpack.c.l.b16 %v86
    %v397 = vunpack.c.h.b16 %v86
    %v398 = vunpack.c.l.b16 %v87
    %v399 = vunpack.c.h.b16 %v87
    %v400 = vunpack.c.l.b16 %v88
    %v401 = vunpack.c.h.b16 %v88
    %v402 = vunpack.c.l.b16 %v89
    %v403 = vunpack.c.h.b16 %v89
    %v404 = vunpack.c.l.b16 %v90
    %v405 = vunpack.c.h.b16 %v90
    %v406 = vunpack.c.l.b16 %v91
    %v407 = vunpack.c.h.b16 %v91
    %v408 = vunpack.c.l.b16 %v92
    %v409 = vunpack.c.h.b16 %v92
    %v410 = vunpack.c.l.b16 %v93
    %v411 = vunpack.c.h.b16 %v93
    %v412 = vunpack.c.l.b16 %v94
    %v413 = vunpack.c.h.b16 %v94
    %v414 = vunpack.c.l.b16 %v95
    %v415 = vunpack.c.h.b16 %v95
    %v416 = vunpack.c.l.b16 %v96
    %v417 = vunpack.c.h.b16 %v96
    %v418 = vunpack.c.l.b16 %v97
    %v419 = vunpack.c.h.b16 %v97
    %v420 = vunpack.c.l.b16 %v98
    %v421 = vunpack.c.h.b16 %v98
    %v422 = vunpack.c.l.b16 %v99
    %v423 = vunpack.c.h.b16 %v99
    %v424 = vpack.c.b16 %v340, %v336
    %v425 = vpack.c.b16 %v341, %v337
    %v426 = vpack.c.b16 %v342, %v338
    %v427 = vpack.c.b16 %v343, %v339
    %v428 = vpack.c.b16 %v348, %v344
    %v429 = vpack.c.b16 %v349, %v345
    %v430 = vpack.c.b16 %v350, %v346
    %v431 = vpack.c.b16 %v351, %v347
    %v432 = vpack.c.b16 %v356, %v352
    %v433 = vpack.c.b16 %v357, %v353
    %v434 = vpack.c.b16 %v358, %v354
    %v435 = vpack.c.b16 %v359, %v355
    %v436 = vpack.c.b16 %v364, %v360
    %v437 = vpack.c.b16 %v365, %v361
    %v438 = vpack.c.b16 %v366, %v362
    %v439 = vpack.c.b16 %v367, %v363
    %v440 = vpack.c.b16 %v372, %v368
    %v441 = vpack.c.b16 %v373, %v369
    %v442 = vpack.c.b16 %v374, %v370
    %v443 = vpack.c.b16 %v375, %v371
    %v444 = vpack.c.b16 %v380, %v376
    %v445 = vpack.c.b16 %v381, %v377
    %v446 = vpack.c.b16 %v382, %v378
    %v447 = vpack.c.b16 %v383, %v379
    %v448 = vpack.c.b16 %v388, %v384
    %v449 = vpack.c.b16 %v389, %v385
    %v450 = vpack.c.b16 %v390, %v386
    %v451 = vpack.c.b16 %v391, %v387
    %v452 = vpack.c.b16 %v396, %v392
    %v453 = vpack.c.b16 %v397, %v393
    %v454 = vpack.c.b16 %v398, %v394
    %v455 = vpack.c.b16 %v399, %v395
    %v456 = vpack.c.b16 %v404, %v400
    %v457 = vpack.c.b16 %v405, %v401
    %v458 = vpack.c.b16 %v406, %v402
    %v459 = vpack.c.b16 %v407, %v403
    %v460 = vpack.c.b16 %v412, %v408
    %v461 = vpack.c.b16 %v413, %v409
    %v462 = vpack.c.b16 %v414, %v410
    %v463 = vpack.c.b16 %v415, %v411
    %v464 = vpack.c.b16 %v420, %v416
    %v465 = vpack.c.b16 %v421, %v417
    %v466 = vpack.c.b16 %v422, %v418
    %v467 = vpack.c.b16 %v423, %v419
    %v704 = vunpack.c.l.b16 %v100
    %v705 = vunpack.c.h.b16 %v100
    %v706 = vunpack.c.l.b16 %v101
    %v707 = vunpack.c.h.b16 %v101
    %v708 = vunpack.c.l.b16 %v102
    %v709 = vunpack.c.h.b16 %v102
    %v710 = vunpack.c.l.b16 %v103
    %v711 = vunpack.c.h.b16 %v103
    %v712 = vunpack.c.l.b16 %v104
    %v713 = vunpack.c.h.b16 %v104
    %v714 = vunpack.c.l.b16 %v105
    %v715 = vunpack.c.h.b16 %v105
    %v716 = vunpack.c.l.b16 %v106
    %v717 = vunpack.c.h.b16 %v106
    %v718 = vunpack.c.l.b16 %v107
    %v719 = vunpack.c.h.b16 %v107
    %v720 = vunpack.c.l.b16 %v108
    %v721 = vunpack.c.h.b16 %v108
    %v722 = vunpack.c.l.b16 %v109
    %v723 = vunpack.c.h.b16 %v109
    %v724 = vunpack.c.l.b16 %v110
    %v725 = vunpack.c.h.b16 %v110
    %v726 = vunpack.c.l.b16 %v111
    %v727 = vunpack.c.h.b16 %v111
    %v728 = vunpack.c.l.b16 %v112
    %v729 = vunpack.c.h.b16 %v112
    %v730 = vunpack.c.l.b16 %v113
    %v731 = vunpack.c.h.b16 %v113
    %v732 = vunpack.c.l.b16 %v114
    %v733 = vunpack.c.h.b16 %v114
    %v734 = vunpack.c.l.b16 %v115
    %v735 = vunpack.c.h.b16 %v115
    %v736 = vunpack.c.l.b16 %v116
    %v737 = vunpack.c.h.b16 %v116
    %v738 = vunpack.c.l.b16 %v117
    %v739 = vunpack.c.h.b16 %v117
    %v740 = vunpack.c.l.b16 %v118
    %v741 = vunpack.c.h.b16 %v118
    %v742 = vunpack.c.l.b16 %v119
    %v743 = vunpack.c.h.b16 %v119
    %v744 = vunpack.c.l.b16 %v120
    %v745 = vunpack.c.h.b16 %v120
    %v746 = vunpack.c.l.b16 %v121
    %v747 = vunpack.c.h.b16 %v121
    %v748 = vunpack.c.l.b16 %v122
    %v749 = vunpack.c.h.b16 %v122
    %v750 = vunpack.c.l.b16 %v123
    %v751 = vunpack.c.h.b16 %v123
    %v752 = vunpack.c.l.b16 %v124
    %v753 = vunpack.c.h.b16 %v124
    %v754 = vunpack.c.l.b16 %v125
    %v755 = vunpack.c.h.b16 %v125
    %v756 = vunpack.c.l.b16 %v126
    %v757 = vunpack.c.h.b16 %v126
    %v758 = vunpack.c.l.b16 %v127
    %v759 = vunpack.c.h.b16 %v127
    %v760 = vunpack.c.l.b16 %v128
    %v761 = vunpack.c.h.b16 %v128
    %v762 = vunpack.c.l.b16 %v129
    %v763 = vunpack.c.h.b16 %v129
    %v764 = vunpack.c.l.b16 %v130
    %v765 = vunpack.c.h.b16 %v130
    %v766 = vunpack.c.l.b16 %v131
    %v767 = vunpack.c.h.b16 %v131
    %v768 = vunpack.c.l.b16 %v132
    %v769 = vunpack.c.h.b16 %v132
    %v770 = vunpack.c.l.b16 %v133
    %v771 = vunpack.c.h.b16 %v133
    %v772 = vunpack.c.l.b16 %v134
    %v773 = vunpack.c.h.b16 %v134
    %v774 = vunpack.c.l.b16 %v135
    %v775 = vunpack.c.h.b16 %v135
    %v776 = vunpack.c.l.b16 %v136
    %v777 = vunpack.c.h.b16 %v136
    %v778 = vunpack.c.l.b16 %v137
    %v779 = vunpack.c.h.b16 %v137
    %v780 = vunpack.c.l.b16 %v138
    %v781 = vunpack.c.h.b16 %v138
    %v782 = vunpack.c.l.b16 %v139
    %v783 = vunpack.c.h.b16 %v139
    %v784 = vunpack.c.l.b16 %v140
    %v785 = vunpack.c.h.b16 %v140
    %v786 = vunpack.c.l.b16 %v141
    %v787 = vunpack.c.h.b16 %v141
    %v788 = vunpack.c.l.b16 %v142
    %v789 = vunpack.c.h.b16 %v142
    %v790 = vunpack.c.l.b16 %v143
    %v791 = vunpack.c.h.b16 %v143
    %v792 = vunpack.c.l.b16 %v144
    %v793 = vunpack.c.h.b16 %v144
    %v794 = vunpack.c.l.b16 %v145
    %v795 = vunpack.c.h.b16 %v145
    %v796 = vunpack.c.l.b16 %v146
    %v797 = vunpack.c.h.b16 %v146
    %v798 = vunpack.c.l.b16 %v147
    %v799 = vunpack.c.h.b16 %v147
    %v800 = vunpack.c.l.b16 %v148
    %v801 = vunpack.c.h.b16 %v148
    %v802 = vunpack.c.l.b16 %v149
    %v803 = vunpack.c.h.b16 %v149
    %v804 = vunpack.c.l.b16 %v150
    %v805 = vunpack.c.h.b16 %v150
    %v806 = vunpack.c.l.b16 %v151
    %v807 = vunpack.c.h.b16 %v151
    %v808 = vunpack.c.l.b16 %v152
    %v809 = vunpack.c.h.b16 %v152
    %v810 = vunpack.c.l.b16 %v153
    %v811 = vunpack.c.h.b16 %v153
    %v812 = vunpack.c.l.b16 %v154
    %v813 = vunpack.c.h.b16 %v154
    %v814 = vunpack.c.l.b16 %v155
    %v815 = vunpack.c.h.b16 %v155
    %v816 = vunpack.c.l.b16 %v156
    %v817 = vunpack.c.h.b16 %v156
    %v818 = vunpack.c.l.b16 %v157
    %v819 = vunpack.c.h.b16 %v157
    %v820 = vunpack.c.l.b16 %v158
    %v821 = vunpack.c.h.b16 %v158
    %v822 = vunpack.c.l.b16 %v159
    %v823 = vunpack.c.h.b16 %v159
    %v824 = vunpack.c.l.b16 %v160
    %v825 = vunpack.c.h.b16 %v160
    %v826 = vunpack.c.l.b16 %v161
    %v827 = vunpack.c.h.b16 %v161
    %v828 = vunpack.c.l.b16 %v162
    %v829 = vunpack.c.h.b16 %v162
    %v830 = vunpack.c.l.b16 %v163
    %v831 = vunpack.c.h.b16 %v163
    %v832 = vunpack.c.l.b16 %v164
    %v833 = vunpack.c.h.b16 %v164
    %v834 = vunpack.c.l.b16 %v165
    %v835 = vunpack.c.h.b16 %v165
    %v836 = vunpack.c.l.b16 %v166
    %v837 = vunpack.c.h.b16 %v166
    %v838 = vunpack.c.l.b16 %v167
    %v839 = vunpack.c.h.b16 %v167
    %v840 = vunpack.c.l.b16 %v168
    %v841 = vunpack.c.h.b16 %v168
    %v842 = vunpack.c.l.b16 %v169
    %v843 = vunpack.c.h.b16 %v169
    %v844 = vunpack.c.l.b16 %v170
    %v845 = vunpack.c.h.b16 %v170
    %v846 = vunpack.c.l.b16 %v171
    %v847 = vunpack.c.h.b16 %v171
    %v848 = vunpack.c.l.b16 %v172
    %v849 = vunpack.c.h.b16 %v172
    %v850 = vunpack.c.l.b16 %v173
    %v851 = vunpack.c.h.b16 %v173
    %v852 = vunpack.c.l.b16 %v174
    %v853 = vunpack.c.h.b16 %v174
    %v854 = vunpack.c.l.b16 %v175
    %v855 = vunpack.c.h.b16 %v175
    %v856 = vunpack.c.l.b16 %v176
    %v857 = vunpack.c.h.b16 %v176
    %v858 = vunpack.c.l.b16 %v177
    %v859 = vunpack.c.h.b16 %v177
    %v860 = vunpack.c.l.b16 %v178
    %v861 = vunpack.c.h.b16 %v178
    %v862 = vunpack.c.l.b16 %v179
    %v863 = vunpack.c.h.b16 %v179
    %v864 = vunpack.c.l.b16 %v180
    %v865 = vunpack.c.h.b16 %v180
    %v866 = vunpack.c.l.b16 %v181
    %v867 = vunpack.c.h.b16 %v181
    %v868 = vunpack.c.l.b16 %v182
    %v869 = vunpack.c.h.b16 %v182
    %v870 = vunpack.c.l.b16 %v183
    %v871 = vunpack.c.h.b16 %v183
    %v872 = vunpack.c.l.b16 %v184
    %v873 = vunpack.c.h.b16 %v184
    %v874 = vunpack.c.l.b16 %v185
    %v875 = vunpack.c.h.b16 %v185
    %v876 = vunpack.c.l.b16 %v186
    %v877 = vunpack.c.h.b16 %v186
    %v878 = vunpack.c.l.b16 %v187
    %v879 = vunpack.c.h.b16 %v187
    %v880 = vunpack.c.l.b16 %v188
    %v881 = vunpack.c.h.b16 %v188
    %v882 = vunpack.c.l.b16 %v189
    %v883 = vunpack.c.h.b16 %v189
    %v884 = vunpack.c.l.b16 %v190
    %v885 = vunpack.c.h.b16 %v190
    %v886 = vunpack.c.l.b16 %v191
    %v887 = vunpack.c.h.b16 %v191
    %v888 = vunpack.c.l.b16 %v192
    %v889 = vunpack.c.h.b16 %v192
    %v890 = vunpack.c.l.b16 %v193
    %v891 = vunpack.c.h.b16 %v193
    %v892 = vunpack.c.l.b16 %v194
    %v893 = vunpack.c.h.b16 %v194
    %v894 = vunpack.c.l.b16 %v195
    %v895 = vunpack.c.h.b16 %v195
    %v896 = vunpack.c.l.b16 %v196
    %v897 = vunpack.c.h.b16 %v196
    %v898 = vunpack.c.l.b16 %v197
    %v899 = vunpack.c.h.b16 %v197
    %v900 = vunpack.c.l.b16 %v198
    %v901 = vunpack.c.h.b16 %v198
    %v902 = vunpack.c.l.b16 %v199
    %v903 = vunpack.c.h.b16 %v199
    %v904 = vunpack.c.l.b16 %v200
    %v905 = vunpack.c.h.b16 %v200
    %v906 = vunpack.c.l.b16 %v201
    %v907 = vunpack.c.h.b16 %v201
    %v908 = vunpack.c.l.b16 %v202
    %v909 = vunpack.c.h.b16 %v202
    %v910 = vunpack.c.l.b16 %v203
    %v911 = vunpack.c.h.b16 %v203
    %v912 = vunpack.c.l.b16 %v204
    %v913 = vunpack.c.h.b16 %v204
    %v914 = vunpack.c.l.b16 %v205
    %v915 = vunpack.c.h.b16 %v205
    %v916 = vunpack.c.l.b16 %v206
    %v917 = vunpack.c.h.b16 %v206
    %v918 = vunpack.c.l.b16 %v207
    %v919 = vunpack.c.h.b16 %v207
    %v920 = vunpack.c.l.b16 %v208
    %v921 = vunpack.c.h.b16 %v208
    %v922 = vunpack.c.l.b16 %v209
    %v923 = vunpack.c.h.b16 %v209
    %v924 = vunpack.c.l.b16 %v210
    %v925 = vunpack.c.h.b16 %v210
    %v926 = vunpack.c.l.b16 %v211
    %v927 = vunpack.c.h.b16 %v211
    %v928 = vunpack.c.l.b16 %v212
    %v929 = vunpack.c.h.b16 %v212
    %v930 = vunpack.c.l.b16 %v213
    %v931 = vunpack.c.h.b16 %v213
    %v932 = vunpack.c.l.b16 %v214
    %v933 = vunpack.c.h.b16 %v214
    %v934 = vunpack.c.l.b16 %v215
    %v935 = vunpack.c.h.b16 %v215
    %v936 = vunpack.c.l.b16 %v216
    %v937 = vunpack.c.h.b16 %v216
    %v938 = vunpack.c.l.b16 %v217
    %v939 = vunpack.c.h.b16 %v217
    %v940 = vunpack.c.l.b16 %v218
    %v941 = vunpack.c.h.b16 %v218
    %v942 = vunpack.c.l.b16 %v219
    %v943 = vunpack.c.h.b16 %v219
    %v944 = vunpack.c.l.b16 %v220
    %v945 = vunpack.c.h.b16 %v220
    %v946 = vunpack.c.l.b16 %v221
    %v947 = vunpack.c.h.b16 %v221
    %v948 = vunpack.c.l.b16 %v222
    %v949 = vunpack.c.h.b16 %v222
    %v950 = vunpack.c.l.b16 %v223
    %v951 = vunpack.c.h.b16 %v223
    %v952 = vunpack.c.l.b16 %v224
    %v953 = vunpack.c.h.b16 %v224
    %v954 = vunpack.c.l.b16 %v225
    %v955 = vunpack.c.h.b16 %v225
    %v956 = vunpack.c.l.b16 %v226
    %v957 = vunpack.c.h.b16 %v226
    %v958 = vunpack.c.l.b16 %v227
    %v959 = vunpack.c.h.b16 %v227
    %v960 = vunpack.c.l.b16 %v228
    %v961 = vunpack.c.h.b16 %v228
    %v962 = vunpack.c.l.b16 %v229
    %v963 = vunpack.c.h.b16 %v229
    %v964 = vunpack.c.l.b16 %v230
    %v965 = vunpack.c.h.b16 %v230
    %v966 = vunpack.c.l.b16 %v231
    %v967 = vunpack.c.h.b16 %v231
    %v968 = vunpack.c.l.b16 %v232
    %v969 = vunpack.c.h.b16 %v232
    %v970 = vunpack.c.l.b16 %v233
    %v971 = vunpack.c.h.b16 %v233
    %v972 = vunpack.c.l.b16 %v234
    %v973 = vunpack.c.h.b16 %v234
    %v974 = vunpack.c.l.b16 %v235
    %v975 = vunpack.c.h.b16 %v235
    %v976 = vunpack.c.l.b16 %v236
    %v977 = vunpack.c.h.b16 %v236
    %v978 = vunpack.c.l.b16 %v237
    %v979 = vunpack.c.h.b16 %v237
    %v980 = vunpack.c.l.b16 %v238
    %v981 = vunpack.c.h.b16 %v238
    %v982 = vunpack.c.l.b16 %v239
    %v983 = vunpack.c.h.b16 %v239
    %v984 = vunpack.c.l.b16 %v240
    %v985 = vunpack.c.h.b16 %v240
    %v986 = vunpack.c.l.b16 %v241
    %v987 = vunpack.c.h.b16 %v241
    %v988 = vunpack.c.l.b16 %v242
    %v989 = vunpack.c.h.b16 %v242
    %v990 = vunpack.c.l.b16 %v243
    %v991 = vunpack.c.h.b16 %v243
    %v992 = vunpack.c.l.b16 %v244
    %v993 = vunpack.c.h.b16 %v244
    %v994 = vunpack.c.l.b16 %v245
    %v995 = vunpack.c.h.b16 %v245
    %v996 = vunpack.c.l.b16 %v246
    %v997 = vunpack.c.h.b16 %v246
    %v998 = vunpack.c.l.b16 %v247
    %v999 = vunpack.c.h.b16 %v247
    %v1000 = vunpack.c.l.b16 %v248
    %v1001 = vunpack.c.h.b16 %v248
    %v1002 = vunpack.c.l.b16 %v249
    %v1003 = vunpack.c.h.b16 %v249
    %v1004 = vunpack.c.l.b16 %v250
    %v1005 = vunpack.c.h.b16 %v250
    %v1006 = vunpack.c.l.b16 %v251
    %v1007 = vunpack.c.h.b16 %v251
    %v1008 = vunpack.c.l.b16 %v252
    %v1009 = vunpack.c.h.b16 %v252
    %v1010 = vunpack.c.l.b16 %v253
    %v1011 = vunpack.c.h.b16 %v253
    %v1012 = vunpack.c.l.b16 %v254
    %v1013 = vunpack.c.h.b16 %v254
    %v1014 = vunpack.c.l.b16 %v255
    %v1015 = vunpack.c.h.b16 %v255
    %v1016 = vunpack.c.l.b16 %v256
    %v1017 = vunpack.c.h.b16 %v256
    %v1018 = vunpack.c.l.b16 %v257
    %v1019 = vunpack.c.h.b16 %v257
    %v1020 = vunpack.c.l.b16 %v258
    %v1021 = vunpack.c.h.b16 %v258
    %v1022 = vunpack.c.l.b16 %v259
    %v1023 = vunpack.c.h.b16 %v259
    %v1024 = vunpack.c.l.b16 %v260
    %v1025 = vunpack.c.h.b16 %v260
    %v1026 = vunpack.c.l.b16 %v261
    %v1027 = vunpack.c.h.b16 %v261
    %v1028 = vunpack.c.l.b16 %v262
    %v1029 = vunpack.c.h.b16 %v262
    %v1030 = vunpack.c.l.b16 %v263
    %v1031 = vunpack.c.h.b16 %v263
    %v1032 = vunpack.c.l.b16 %v264
    %v1033 = vunpack.c.h.b16 %v264
    %v1034 = vunpack.c.l.b16 %v265
    %v1035 = vunpack.c.h.b16 %v265
    %v1036 = vunpack.c.l.b16 %v266
    %v1037 = vunpack.c.h.b16 %v266
    %v1038 = vunpack.c.l.b16 %v267
    %v1039 = vunpack.c.h.b16 %v267
    %v1040 = vunpack.c.l.b16 %v268
    %v1041 = vunpack.c.h.b16 %v268
    %v1042 = vunpack.c.l.b16 %v269
    %v1043 = vunpack.c.h.b16 %v269
    %v1044 = vunpack.c.l.b16 %v270
    %v1045 = vunpack.c.h.b16 %v270
    %v1046 = vunpack.c.l.b16 %v271
    %v1047 = vunpack.c.h.b16 %v271
    %v1048 = vunpack.c.l.b16 %v272
    %v1049 = vunpack.c.h.b16 %v272
    %v1050 = vunpack.c.l.b16 %v273
    %v1051 = vunpack.c.h.b16 %v273
    %v1052 = vunpack.c.l.b16 %v274
    %v1053 = vunpack.c.h.b16 %v274
    %v1054 = vunpack.c.l.b16 %v275
    %v1055 = vunpack.c.h.b16 %v275
    %v1056 = vunpack.c.l.b16 %v276
    %v1057 = vunpack.c.h.b16 %v276
    %v1058 = vunpack.c.l.b16 %v277
    %v1059 = vunpack.c.h.b16 %v277
    %v1060 = vunpack.c.l.b16 %v278
    %v1061 = vunpack.c.h.b16 %v278
    %v1062 = vunpack.c.l.b16 %v279
    %v1063 = vunpack.c.h.b16 %v279
    %v1064 = vunpack.c.l.b16 %v280
    %v1065 = vunpack.c.h.b16 %v280
    %v1066 = vunpack.c.l.b16 %v281
    %v1067 = vunpack.c.h.b16 %v281
    %v1068 = vunpack.c.l.b16 %v282
    %v1069 = vunpack.c.h.b16 %v282
    %v1070 = vunpack.c.l.b16 %v283
    %v1071 = vunpack.c.h.b16 %v283
    %v1072 = vunpack.c.l.b16 %v284
    %v1073 = vunpack.c.h.b16 %v284
    %v1074 = vunpack.c.l.b16 %v285
    %v1075 = vunpack.c.h.b16 %v285
    %v1076 = vunpack.c.l.b16 %v286
    %v1077 = vunpack.c.h.b16 %v286
    %v1078 = vunpack.c.l.b16 %v287
    %v1079 = vunpack.c.h.b16 %v287
    %v1080 = vunpack.c.l.b16 %v288
    %v1081 = vunpack.c.h.b16 %v288
    %v1082 = vunpack.c.l.b16 %v289
    %v1083 = vunpack.c.h.b16 %v289
    %v1084 = vunpack.c.l.b16 %v290
    %v1085 = vunpack.c.h.b16 %v290
    %v1086 = vunpack.c.l.b16 %v291
    %v1087 = vunpack.c.h.b16 %v291
    %v1088 = vpack.c.b16 %v710, %v704
    %v1089 = vpack.c.b16 %v711, %v705
    %v1090 = vpack.c.b16 %v712, %v706
    %v1091 = vpack.c.b16 %v713, %v707
    %v1092 = vpack.c.b16 %v714, %v708
    %v1093 = vpack.c.b16 %v715, %v709
    %v1094 = vpack.c.b16 %v722, %v716
    %v1095 = vpack.c.b16 %v723, %v717
    %v1096 = vpack.c.b16 %v724, %v718
    %v1097 = vpack.c.b16 %v725, %v719
    %v1098 = vpack.c.b16 %v726, %v720
    %v1099 = vpack.c.b16 %v727, %v721
    %v1100 = vpack.c.b16 %v734, %v728
    %v1101 = vpack.c.b16 %v735, %v729
    %v1102 = vpack.c.b16 %v736, %v730
    %v1103 = vpack.c.b16 %v737, %v731
    %v1104 = vpack.c.b16 %v738, %v732
    %v1105 = vpack.c.b16 %v739, %v733
    %v1106 = vpack.c.b16 %v746, %v740
    %v1107 = vpack.c.b16 %v747, %v741
    %v1108 = vpack.c.b16 %v748, %v742
    %v1109 = vpack.c.b16 %v749, %v743
    %v1110 = vpack.c.b16 %v750, %v744
    %v1111 = vpack.c.b16 %v751, %v745
    %v1112 = vpack.c.b16 %v758, %v752
    %v1113 = vpack.c.b16 %v759, %v753
    %v1114 = vpack.c.b16 %v760, %v754
    %v1115 = vpack.c.b16 %v761, %v755
    %v1116 = vpack.c.b16 %v762, %v756
    %v1117 = vpack.c.b16 %v763, %v757
    %v1118 = vpack.c.b16 %v770, %v764
    %v1119 = vpack.c.b16 %v771, %v765
    %v1120 = vpack.c.b16 %v772, %v766
    %v1121 = vpack.c.b16 %v773, %v767
    %v1122 = vpack.c.b16 %v774, %v768
    %v1123 = vpack.c.b16 %v775, %v769
    %v1124 = vpack.c.b16 %v782, %v776
    %v1125 = vpack.c.b16 %v783, %v777
    %v1126 = vpack.c.b16 %v784, %v778
    %v1127 = vpack.c.b16 %v785, %v779
    %v1128 = vpack.c.b16 %v786, %v780
    %v1129 = vpack.c.b16 %v787, %v781
    %v1130 = vpack.c.b16 %v794, %v788
    %v1131 = vpack.c.b16 %v795, %v789
    %v1132 = vpack.c.b16 %v796, %v790
    %v1133 = vpack.c.b16 %v797, %v791
    %v1134 = vpack.c.b16 %v798, %v792
    %v1135 = vpack.c.b16 %v799, %v793
    %v1136 = vpack.c.b16 %v806, %v800
    %v1137 = vpack.c.b16 %v807, %v801
    %v1138 = vpack.c.b16 %v808, %v802
    %v1139 = vpack.c.b16 %v809, %v803
    %v1140 = vpack.c.b16 %v810, %v804
    %v1141 = vpack.c.b16 %v811, %v805
    %v1142 = vpack.c.b16 %v818, %v812
    %v1143 = vpack.c.b16 %v819, %v813
    %v1144 = vpack.c.b16 %v820, %v814
    %v1145 = vpack.c.b16 %v821, %v815
    %v1146 = vpack.c.b16 %v822, %v816
    %v1147 = vpack.c.b16 %v823, %v817
    %v1148 = vpack.c.b16 %v830, %v824
    %v1149 = vpack.c.b16 %v831, %v825
    %v1150 = vpack.c.b16 %v832, %v826
    %v1151 = vpack.c.b16 %v833, %v827
    %v1152 = vpack.c.b16 %v834, %v828
    %v1153 = vpack.c.b16 %v835, %v829
    %v1154 = vpack.c.b16 %v842, %v836
    %v1155 = vpack.c.b16 %v843, %v837
    %v1156 = vpack.c.b16 %v844, %v838
    %v1157 = vpack.c.b16 %v845, %v839
    %v1158 = vpack.c.b16 %v846, %v840
    %v1159 = vpack.c.b16 %v847, %v841
    %v1160 = vpack.c.b16 %v854, %v848
    %v1161 = vpack.c.b16 %v855, %v849
    %v1162 = vpack.c.b16 %v856, %v850
    %v1163 = vpack.c.b16 %v857, %v851
    %v1164 = vpack.c.b16 %v858, %v852
    %v1165 = vpack.c.b16 %v859, %v853
    %v1166 = vpack.c.b16 %v866, %v860
    %v1167 = vpack.c.b16 %v867, %v861
    %v1168 = vpack.c.b16 %v868, %v862
    %v1169 = vpack.c.b16 %v869, %v863
    %v1170 = vpack.c.b16 %v870, %v864
    %v1171 = vpack.c.b16 %v871, %v865
    %v1172 = vpack.c.b16 %v878, %v872
    %v1173 = vpack.c.b16 %v879, %v873
    %v1174 = vpack.c.b16 %v880, %v874
    %v1175 = vpack.c.b16 %v881, %v875
    %v1176 = vpack.c.b16 %v882, %v876
    %v1177 = vpack.c.b16 %v883, %v877
    %v1178 = vpack.c.b16 %v890, %v884
    %v1179 = vpack.c.b16 %v891, %v885
    %v1180 = vpack.c.b16 %v892, %v886
    %v1181 = vpack.c.b16 %v893, %v887
    %v1182 = vpack.c.b16 %v894, %v888
    %v1183 = vpack.c.b16 %v895, %v889
    %v1184 = vpack.c.b16 %v902, %v896
    %v1185 = vpack.c.b16 %v903, %v897
    %v1186 = vpack.c.b16 %v904, %v898
    %v1187 = vpack.c.b16 %v905, %v899
    %v1188 = vpack.c.b16 %v906, %v900
    %v1189 = vpack.c.b16 %v907, %v901
    %v1190 = vpack.c.b16 %v914, %v908
    %v1191 = vpack.c.b16 %v915, %v909
    %v1192 = vpack.c.b16 %v916, %v910
    %v1193 = vpack.c.b16 %v917, %v911
    %v1194 = vpack.c.b16 %v918, %v912
    %v1195 = vpack.c.b16 %v919, %v913
    %v1196 = vpack.c.b16 %v926, %v920
    %v1197 = vpack.c.b16 %v927, %v921
    %v1198 = vpack.c.b16 %v928, %v922
    %v1199 = vpack.c.b16 %v929, %v923
    %v1200 = vpack.c.b16 %v930, %v924
    %v1201 = vpack.c.b16 %v931, %v925
    %v1202 = vpack.c.b16 %v938, %v932
    %v1203 = vpack.c.b16 %v939, %v933
    %v1204 = vpack.c.b16 %v940, %v934
    %v1205 = vpack.c.b16 %v941, %v935
    %v1206 = vpack.c.b16 %v942, %v936
    %v1207 = vpack.c.b16 %v943, %v937
    %v1208 = vpack.c.b16 %v950, %v944
    %v1209 = vpack.c.b16 %v951, %v945
    %v1210 = vpack.c.b16 %v952, %v946
    %v1211 = vpack.c.b16 %v953, %v947
    %v1212 = vpack.c.b16 %v954, %v948
    %v1213 = vpack.c.b16 %v955, %v949
    %v1214 = vpack.c.b16 %v962, %v956
    %v1215 = vpack.c.b16 %v963, %v957
    %v1216 = vpack.c.b16 %v964, %v958
    %v1217 = vpack.c.b16 %v965, %v959
    %v1218 = vpack.c.b16 %v966, %v960
    %v1219 = vpack.c.b16 %v967, %v961
    %v1220 = vpack.c.b16 %v974, %v968
    %v1221 = vpack.c.b16 %v975, %v969
    %v1222 = vpack.c.b16 %v976, %v970
    %v1223 = vpack.c.b16 %v977, %v971
    %v1224 = vpack.c.b16 %v978, %v972
    %v1225 = vpack.c.b16 %v979, %v973
    %v1226 = vpack.c.b16 %v986, %v980
    %v1227 = vpack.c.b16 %v987, %v981
    %v1228 = vpack.c.b16 %v988, %v982
    %v1229 = vpack.c.b16 %v989, %v983
    %v1230 = vpack.c.b16 %v990, %v984
    %v1231 = vpack.c.b16 %v991, %v985
    %v1232 = vpack.c.b16 %v998, %v992
    %v1233 = vpack.c.b16 %v999, %v993
    %v1234 = vpack.c.b16 %v1000, %v994
    %v1235 = vpack.c.b16 %v1001, %v995
    %v1236 = vpack.c.b16 %v1002, %v996
    %v1237 = vpack.c.b16 %v1003, %v997
    %v1238 = vpack.c.b16 %v1010, %v1004
    %v1239 = vpack.c.b16 %v1011, %v1005
    %v1240 = vpack.c.b16 %v1012, %v1006
    %v1241 = vpack.c.b16 %v1013, %v1007
    %v1242 = vpack.c.b16 %v1014, %v1008
    %v1243 = vpack.c.b16 %v1015, %v1009
    %v1244 = vpack.c.b16 %v1022, %v1016
    %v1245 = vpack.c.b16 %v1023, %v1017
    %v1246 = vpack.c.b16 %v1024, %v1018
    %v1247 = vpack.c.b16 %v1025, %v1019
    %v1248 = vpack.c.b16 %v1026, %v1020
    %v1249 = vpack.c.b16 %v1027, %v1021
    %v1250 = vpack.c.b16 %v1034, %v1028
    %v1251 = vpack.c.b16 %v1035, %v1029
    %v1252 = vpack.c.b16 %v1036, %v1030
    %v1253 = vpack.c.b16 %v1037, %v1031
    %v1254 = vpack.c.b16 %v1038, %v1032
    %v1255 = vpack.c.b16 %v1039, %v1033
    %v1256 = vpack.c.b16 %v1046, %v1040
    %v1257 = vpack.c.b16 %v1047, %v1041
    %v1258 = vpack.c.b16 %v1048, %v1042
    %v1259 = vpack.c.b16 %v1049, %v1043
    %v1260 = vpack.c.b16 %v1050, %v1044
    %v1261 = vpack.c.b16 %v1051, %v1045
    %v1262 = vpack.c.b16 %v1058, %v1052
    %v1263 = vpack.c.b16 %v1059, %v1053
    %v1264 = vpack.c.b16 %v1060, %v1054
    %v1265 = vpack.c.b16 %v1061, %v1055
    %v1266 = vpack.c.b16 %v1062, %v1056
    %v1267 = vpack.c.b16 %v1063, %v1057
    %v1268 = vpack.c.b16 %v1070, %v1064
    %v1269 = vpack.c.b16 %v1071, %v1065
    %v1270 = vpack.c.b16 %v1072, %v1066
    %v1271 = vpack.c.b16 %v1073, %v1067
    %v1272 = vpack.c.b16 %v1074, %v1068
    %v1273 = vpack.c.b16 %v1075, %v1069
    %v1274 = vpack.c.b16 %v1082, %v1076
    %v1275 = vpack.c.b16 %v1083, %v1077
    %v1276 = vpack.c.b16 %v1084, %v1078
    %v1277 = vpack.c.b16 %v1085, %v1079
    %v1278 = vpack.c.b16 %v1086, %v1080
    %v1279 = vpack.c.b16 %v1087, %v1081
    %1472 = vmatprep.subr.bf16.mxu0 %v1131
    %1473 = vmatpush1.bf16.msra.mxu0 %v1130
    %1474 = vmatprep.subr.bf16.mxu0 %v1125
    %1475 = vmatpush1.bf16.msra.mxu0 %v1124
    %1476 = vmatprep.subr.bf16.mxu0 %v1119
    %1477 = vmatpush1.bf16.msra.mxu0 %v1118
    %1478 = vmatprep.subr.bf16.mxu0 %v1113
    %1479 = vmatpush1.bf16.msra.mxu0 %v1112
    %1480 = vmatprep.subr.bf16.mxu0 %v1107
    %1481 = vmatpush1.bf16.msra.mxu0 %v1106
    %1482 = vmatprep.subr.bf16.mxu0 %v1101
    %1483 = vmatpush1.bf16.msra.mxu0 %v1100
    %1484 = vmatprep.subr.bf16.mxu0 %v1095
    %1485 = vmatpush1.bf16.msra.mxu0 %v1094
    %1486 = vmatprep.subr.bf16.mxu0 %v1089
    %1487 = vmatpush1.bf16.msra.mxu0 %v1088
    %1488 = vmatprep.subr.bf16.mxu0 %v1179
    %1489 = vmatpush2.bf16.msra.mxu0 %v1178
    %1490 = vmatprep.subr.bf16.mxu0 %v1173
    %1491 = vmatpush2.bf16.msra.mxu0 %v1172
    %1492 = vmatprep.subr.bf16.mxu0 %v1167
    %1493 = vmatpush2.bf16.msra.mxu0 %v1166
    %1494 = vmatprep.subr.bf16.mxu0 %v1161
    %1495 = vmatpush2.bf16.msra.mxu0 %v1160
    %1496 = vmatprep.subr.bf16.mxu0 %v1155
    %1497 = vmatpush2.bf16.msra.mxu0 %v1154
    %1498 = vmatprep.subr.bf16.mxu0 %v1149
    %1499 = vmatpush2.bf16.msra.mxu0 %v1148
    %1500 = vmatprep.subr.bf16.mxu0 %v1143
    %1501 = vmatpush2.bf16.msra.mxu0 %v1142
    %1502 = vmatprep.subr.bf16.mxu0 %v1137
    %1503 = vmatpush2.bf16.msra.mxu0 %v1136
    %1504 = vmatprep.mubr.bf16.mxu0 %v425
    %1505 = vmatmul.mubr.bf16.gmra.mxu0 %v424
    %v1506 = vpop.f32.mrf.mxu0
    %v1507 = vadd.f32 0.0, %v1506
    %v1508 = vpop.f32.mrf.mxu0
    %v1509 = vadd.f32 0.0, %v1508
    %v1510 = vpop.f32.mrf.mxu0
    %v1511 = vadd.f32 0.0, %v1510
    %v1512 = vpop.f32.mrf.mxu0
    %v1513 = vadd.f32 0.0, %v1512
    %1514 = vmatprep.mubr.bf16.mxu0 %v429
    %1515 = vmatmul.mubr.bf16.gmra.mxu0 %v428
    %v1516 = vpop.f32.mrf.mxu0
    %v1517 = vadd.f32 0.0, %v1516
    %v1518 = vpop.f32.mrf.mxu0
    %v1519 = vadd.f32 0.0, %v1518
    %v1520 = vpop.f32.mrf.mxu0
    %v1521 = vadd.f32 0.0, %v1520
    %v1522 = vpop.f32.mrf.mxu0
    %v1523 = vadd.f32 0.0, %v1522
    %1524 = vmatprep.mubr.bf16.mxu0 %v433
    %1525 = vmatmul.mubr.bf16.gmra.mxu0 %v432
    %v1526 = vpop.f32.mrf.mxu0
    %v1527 = vadd.f32 0.0, %v1526
    %v1528 = vpop.f32.mrf.mxu0
    %v1529 = vadd.f32 0.0, %v1528
    %v1530 = vpop.f32.mrf.mxu0
    %v1531 = vadd.f32 0.0, %v1530
    %v1532 = vpop.f32.mrf.mxu0
    %v1533 = vadd.f32 0.0, %v1532
    %1534 = vmatprep.mubr.bf16.mxu0 %v437
    %1535 = vmatmul.mubr.bf16.gmra.mxu0 %v436
    %v1536 = vpop.f32.mrf.mxu0
    %v1537 = vadd.f32 0.0, %v1536
    %v1538 = vpop.f32.mrf.mxu0
    %v1539 = vadd.f32 0.0, %v1538
    %v1540 = vpop.f32.mrf.mxu0
    %v1541 = vadd.f32 0.0, %v1540
    %v1542 = vpop.f32.mrf.mxu0
    %v1543 = vadd.f32 0.0, %v1542
    %1544 = vmatprep.mubr.bf16.mxu0 %v441
    %1545 = vmatmul.mubr.bf16.gmra.mxu0 %v440
    %v1546 = vpop.f32.mrf.mxu0
    %v1547 = vadd.f32 0.0, %v1546
    %v1548 = vpop.f32.mrf.mxu0
    %v1549 = vadd.f32 0.0, %v1548
    %v1550 = vpop.f32.mrf.mxu0
    %v1551 = vadd.f32 0.0, %v1550
    %v1552 = vpop.f32.mrf.mxu0
    %v1553 = vadd.f32 0.0, %v1552
    %1554 = vmatprep.mubr.bf16.mxu0 %v445
    %1555 = vmatmul.mubr.bf16.gmra.mxu0 %v444
    %v1556 = vpop.f32.mrf.mxu0
    %v1557 = vadd.f32 0.0, %v1556
    %v1558 = vpop.f32.mrf.mxu0
    %v1559 = vadd.f32 0.0, %v1558
    %v1560 = vpop.f32.mrf.mxu0
    %v1561 = vadd.f32 0.0, %v1560
    %v1562 = vpop.f32.mrf.mxu0
    %v1563 = vadd.f32 0.0, %v1562
    %1564 = vmatprep.mubr.bf16.mxu0 %v449
    %1565 = vmatmul.mubr.bf16.gmra.mxu0 %v448
    %v1566 = vpop.f32.mrf.mxu0
    %v1567 = vadd.f32 0.0, %v1566
    %v1568 = vpop.f32.mrf.mxu0
    %v1569 = vadd.f32 0.0, %v1568
    %v1570 = vpop.f32.mrf.mxu0
    %v1571 = vadd.f32 0.0, %v1570
    %v1572 = vpop.f32.mrf.mxu0
    %v1573 = vadd.f32 0.0, %v1572
    %1574 = vmatprep.mubr.bf16.mxu0 %v453
    %1575 = vmatmul.mubr.bf16.gmra.mxu0 %v452
    %v1576 = vpop.f32.mrf.mxu0
    %v1577 = vadd.f32 0.0, %v1576
    %v1578 = vpop.f32.mrf.mxu0
    %v1579 = vadd.f32 0.0, %v1578
    %v1580 = vpop.f32.mrf.mxu0
    %v1581 = vadd.f32 0.0, %v1580
    %v1582 = vpop.f32.mrf.mxu0
    %v1583 = vadd.f32 0.0, %v1582
    %1584 = vmatprep.mubr.bf16.mxu0 %v457
    %1585 = vmatmul.mubr.bf16.gmra.mxu0 %v456
    %v1586 = vpop.f32.mrf.mxu0
    %v1587 = vadd.f32 0.0, %v1586
    %v1588 = vpop.f32.mrf.mxu0
    %v1589 = vadd.f32 0.0, %v1588
    %v1590 = vpop.f32.mrf.mxu0
    %v1591 = vadd.f32 0.0, %v1590
    %v1592 = vpop.f32.mrf.mxu0
    %v1593 = vadd.f32 0.0, %v1592
    %1594 = vmatprep.mubr.bf16.mxu0 %v461
    %1595 = vmatmul.mubr.bf16.gmra.mxu0 %v460
    %v1596 = vpop.f32.mrf.mxu0
    %v1597 = vadd.f32 0.0, %v1596
    %v1598 = vpop.f32.mrf.mxu0
    %v1599 = vadd.f32 0.0, %v1598
    %v1600 = vpop.f32.mrf.mxu0
    %v1601 = vadd.f32 0.0, %v1600
    %v1602 = vpop.f32.mrf.mxu0
    %v1603 = vadd.f32 0.0, %v1602
    %1604 = vmatprep.mubr.bf16.mxu0 %v465
    %1605 = vmatmul.mubr.bf16.gmra.mxu0 %v464
    %v1606 = vpop.f32.mrf.mxu0
    %v1607 = vadd.f32 0.0, %v1606
    %v1608 = vpop.f32.mrf.mxu0
    %v1609 = vadd.f32 0.0, %v1608
    %v1610 = vpop.f32.mrf.mxu0
    %v1611 = vadd.f32 0.0, %v1610
    %v1612 = vpop.f32.mrf.mxu0
    %v1613 = vadd.f32 0.0, %v1612
    %1614 = vdwg.mxu0
    %1615 = vmatprep.subr.bf16.mxu0 %v1227
    %1616 = vmatpush1.bf16.msra.mxu0 %v1226
    %1617 = vmatprep.subr.bf16.mxu0 %v1221
    %1618 = vmatpush1.bf16.msra.mxu0 %v1220
    %1619 = vmatprep.subr.bf16.mxu0 %v1215
    %1620 = vmatpush1.bf16.msra.mxu0 %v1214
    %1621 = vmatprep.subr.bf16.mxu0 %v1209
    %1622 = vmatpush1.bf16.msra.mxu0 %v1208
    %1623 = vmatprep.subr.bf16.mxu0 %v1203
    %1624 = vmatpush1.bf16.msra.mxu0 %v1202
    %1625 = vmatprep.subr.bf16.mxu0 %v1197
    %1626 = vmatpush1.bf16.msra.mxu0 %v1196
    %1627 = vmatprep.subr.bf16.mxu0 %v1191
    %1628 = vmatpush1.bf16.msra.mxu0 %v1190
    %1629 = vmatprep.subr.bf16.mxu0 %v1185
    %1630 = vmatpush1.bf16.msra.mxu0 %v1184
    %1631 = vmatprep.subr.bf16.mxu0 %v1275
    %1632 = vmatpush2.bf16.msra.mxu0 %v1274
    %1633 = vmatprep.subr.bf16.mxu0 %v1269
    %1634 = vmatpush2.bf16.msra.mxu0 %v1268
    %1635 = vmatprep.subr.bf16.mxu0 %v1263
    %1636 = vmatpush2.bf16.msra.mxu0 %v1262
    %1637 = vmatprep.subr.bf16.mxu0 %v1257
    %1638 = vmatpush2.bf16.msra.mxu0 %v1256
    %1639 = vmatprep.subr.bf16.mxu0 %v1251
    %1640 = vmatpush2.bf16.msra.mxu0 %v1250
    %1641 = vmatprep.subr.bf16.mxu0 %v1245
    %1642 = vmatpush2.bf16.msra.mxu0 %v1244
    %1643 = vmatprep.subr.bf16.mxu0 %v1239
    %1644 = vmatpush2.bf16.msra.mxu0 %v1238
    %1645 = vmatprep.subr.bf16.mxu0 %v1233
    %1646 = vmatpush2.bf16.msra.mxu0 %v1232
    %1647 = vmatprep.mubr.bf16.mxu0 %v427
    %1648 = vmatmul.mubr.bf16.gmra.mxu0 %v426
    %v1649 = vpop.f32.mrf.mxu0
    %v1650 = vadd.f32 %v1507, %v1649
    %v1651 = vpop.f32.mrf.mxu0
    %v1652 = vadd.f32 %v1509, %v1651
    %v1653 = vpop.f32.mrf.mxu0
    %v1654 = vadd.f32 %v1511, %v1653
    %v1655 = vpop.f32.mrf.mxu0
    %v1656 = vadd.f32 %v1513, %v1655
    %1657 = vmatprep.mubr.bf16.mxu0 %v431
    %1658 = vmatmul.mubr.bf16.gmra.mxu0 %v430
    %v1659 = vpop.f32.mrf.mxu0
    %v1660 = vadd.f32 %v1517, %v1659
    %v1661 = vpop.f32.mrf.mxu0
    %v1662 = vadd.f32 %v1519, %v1661
    %v1663 = vpop.f32.mrf.mxu0
    %v1664 = vadd.f32 %v1521, %v1663
    %v1665 = vpop.f32.mrf.mxu0
    %v1666 = vadd.f32 %v1523, %v1665
    %1667 = vmatprep.mubr.bf16.mxu0 %v435
    %1668 = vmatmul.mubr.bf16.gmra.mxu0 %v434
    %v1669 = vpop.f32.mrf.mxu0
    %v1670 = vadd.f32 %v1527, %v1669
    %v1671 = vpop.f32.mrf.mxu0
    %v1672 = vadd.f32 %v1529, %v1671
    %v1673 = vpop.f32.mrf.mxu0
    %v1674 = vadd.f32 %v1531, %v1673
    %v1675 = vpop.f32.mrf.mxu0
    %v1676 = vadd.f32 %v1533, %v1675
    %1677 = vmatprep.mubr.bf16.mxu0 %v439
    %1678 = vmatmul.mubr.bf16.gmra.mxu0 %v438
    %v1679 = vpop.f32.mrf.mxu0
    %v1680 = vadd.f32 %v1537, %v1679
    %v1681 = vpop.f32.mrf.mxu0
    %v1682 = vadd.f32 %v1539, %v1681
    %v1683 = vpop.f32.mrf.mxu0
    %v1684 = vadd.f32 %v1541, %v1683
    %v1685 = vpop.f32.mrf.mxu0
    %v1686 = vadd.f32 %v1543, %v1685
    %1687 = vmatprep.mubr.bf16.mxu0 %v443
    %1688 = vmatmul.mubr.bf16.gmra.mxu0 %v442
    %v1689 = vpop.f32.mrf.mxu0
    %v1690 = vadd.f32 %v1547, %v1689
    %v1691 = vpop.f32.mrf.mxu0
    %v1692 = vadd.f32 %v1549, %v1691
    %v1693 = vpop.f32.mrf.mxu0
    %v1694 = vadd.f32 %v1551, %v1693
    %v1695 = vpop.f32.mrf.mxu0
    %v1696 = vadd.f32 %v1553, %v1695
    %1697 = vmatprep.mubr.bf16.mxu0 %v447
    %1698 = vmatmul.mubr.bf16.gmra.mxu0 %v446
    %v1699 = vpop.f32.mrf.mxu0
    %v1700 = vadd.f32 %v1557, %v1699
    %v1701 = vpop.f32.mrf.mxu0
    %v1702 = vadd.f32 %v1559, %v1701
    %v1703 = vpop.f32.mrf.mxu0
    %v1704 = vadd.f32 %v1561, %v1703
    %v1705 = vpop.f32.mrf.mxu0
    %v1706 = vadd.f32 %v1563, %v1705
    %1707 = vmatprep.mubr.bf16.mxu0 %v451
    %1708 = vmatmul.mubr.bf16.gmra.mxu0 %v450
    %v1709 = vpop.f32.mrf.mxu0
    %v1710 = vadd.f32 %v1567, %v1709
    %v1711 = vpop.f32.mrf.mxu0
    %v1712 = vadd.f32 %v1569, %v1711
    %v1713 = vpop.f32.mrf.mxu0
    %v1714 = vadd.f32 %v1571, %v1713
    %v1715 = vpop.f32.mrf.mxu0
    %v1716 = vadd.f32 %v1573, %v1715
    %1717 = vmatprep.mubr.bf16.mxu0 %v455
    %1718 = vmatmul.mubr.bf16.gmra.mxu0 %v454
    %v1719 = vpop.f32.mrf.mxu0
    %v1720 = vadd.f32 %v1577, %v1719
    %v1721 = vpop.f32.mrf.mxu0
    %v1722 = vadd.f32 %v1579, %v1721
    %v1723 = vpop.f32.mrf.mxu0
    %v1724 = vadd.f32 %v1581, %v1723
    %v1725 = vpop.f32.mrf.mxu0
    %v1726 = vadd.f32 %v1583, %v1725
    %1727 = vmatprep.mubr.bf16.mxu0 %v459
    %1728 = vmatmul.mubr.bf16.gmra.mxu0 %v458
    %v1729 = vpop.f32.mrf.mxu0
    %v1730 = vadd.f32 %v1587, %v1729
    %v1731 = vpop.f32.mrf.mxu0
    %v1732 = vadd.f32 %v1589, %v1731
    %v1733 = vpop.f32.mrf.mxu0
    %v1734 = vadd.f32 %v1591, %v1733
    %v1735 = vpop.f32.mrf.mxu0
    %v1736 = vadd.f32 %v1593, %v1735
    %1737 = vmatprep.mubr.bf16.mxu0 %v463
    %1738 = vmatmul.mubr.bf16.gmra.mxu0 %v462
    %v1739 = vpop.f32.mrf.mxu0
    %v1740 = vadd.f32 %v1597, %v1739
    %v1741 = vpop.f32.mrf.mxu0
    %v1742 = vadd.f32 %v1599, %v1741
    %v1743 = vpop.f32.mrf.mxu0
    %v1744 = vadd.f32 %v1601, %v1743
    %v1745 = vpop.f32.mrf.mxu0
    %v1746 = vadd.f32 %v1603, %v1745
    %1747 = vmatprep.mubr.bf16.mxu0 %v467
    %1748 = vmatmul.mubr.bf16.gmra.mxu0 %v466
    %v1749 = vpop.f32.mrf.mxu0
    %v1750 = vadd.f32 %v1607, %v1749
    %v1751 = vpop.f32.mrf.mxu0
    %v1752 = vadd.f32 %v1609, %v1751
    %v1753 = vpop.f32.mrf.mxu0
    %v1754 = vadd.f32 %v1611, %v1753
    %v1755 = vpop.f32.mrf.mxu0
    %v1756 = vadd.f32 %v1613, %v1755
    %1757 = vdwg.mxu0
    %1758 = vmatprep.subr.bf16.mxu0 %v1133
    %1759 = vmatpush1.bf16.msra.mxu0 %v1132
    %1760 = vmatprep.subr.bf16.mxu0 %v1127
    %1761 = vmatpush1.bf16.msra.mxu0 %v1126
    %1762 = vmatprep.subr.bf16.mxu0 %v1121
    %1763 = vmatpush1.bf16.msra.mxu0 %v1120
    %1764 = vmatprep.subr.bf16.mxu0 %v1115
    %1765 = vmatpush1.bf16.msra.mxu0 %v1114
    %1766 = vmatprep.subr.bf16.mxu0 %v1109
    %1767 = vmatpush1.bf16.msra.mxu0 %v1108
    %1768 = vmatprep.subr.bf16.mxu0 %v1103
    %1769 = vmatpush1.bf16.msra.mxu0 %v1102
    %1770 = vmatprep.subr.bf16.mxu0 %v1097
    %1771 = vmatpush1.bf16.msra.mxu0 %v1096
    %1772 = vmatprep.subr.bf16.mxu0 %v1091
    %1773 = vmatpush1.bf16.msra.mxu0 %v1090
    %1774 = vmatprep.subr.bf16.mxu0 %v1181
    %1775 = vmatpush2.bf16.msra.mxu0 %v1180
    %1776 = vmatprep.subr.bf16.mxu0 %v1175
    %1777 = vmatpush2.bf16.msra.mxu0 %v1174
    %1778 = vmatprep.subr.bf16.mxu0 %v1169
    %1779 = vmatpush2.bf16.msra.mxu0 %v1168
    %1780 = vmatprep.subr.bf16.mxu0 %v1163
    %1781 = vmatpush2.bf16.msra.mxu0 %v1162
    %1782 = vmatprep.subr.bf16.mxu0 %v1157
    %1783 = vmatpush2.bf16.msra.mxu0 %v1156
    %1784 = vmatprep.subr.bf16.mxu0 %v1151
    %1785 = vmatpush2.bf16.msra.mxu0 %v1150
    %1786 = vmatprep.subr.bf16.mxu0 %v1145
    %1787 = vmatpush2.bf16.msra.mxu0 %v1144
    %1788 = vmatprep.subr.bf16.mxu0 %v1139
    %1789 = vmatpush2.bf16.msra.mxu0 %v1138
    %1790 = vmatprep.mubr.bf16.mxu0 %v425
    %1791 = vmatmul.mubr.bf16.gmra.mxu0 %v424
    %v1792 = vpop.f32.mrf.mxu0
    %v1793 = vadd.f32 0.0, %v1792
    %v1794 = vpop.f32.mrf.mxu0
    %v1795 = vadd.f32 0.0, %v1794
    %v1796 = vpop.f32.mrf.mxu0
    %v1797 = vadd.f32 0.0, %v1796
    %v1798 = vpop.f32.mrf.mxu0
    %v1799 = vadd.f32 0.0, %v1798
    %1800 = vmatprep.mubr.bf16.mxu0 %v429
    %1801 = vmatmul.mubr.bf16.gmra.mxu0 %v428
    %v1802 = vpop.f32.mrf.mxu0
    %v1803 = vadd.f32 0.0, %v1802
    %v1804 = vpop.f32.mrf.mxu0
    %v1805 = vadd.f32 0.0, %v1804
    %v1806 = vpop.f32.mrf.mxu0
    %v1807 = vadd.f32 0.0, %v1806
    %v1808 = vpop.f32.mrf.mxu0
    %v1809 = vadd.f32 0.0, %v1808
    %1810 = vmatprep.mubr.bf16.mxu0 %v433
    %1811 = vmatmul.mubr.bf16.gmra.mxu0 %v432
    %v1812 = vpop.f32.mrf.mxu0
    %v1813 = vadd.f32 0.0, %v1812
    %v1814 = vpop.f32.mrf.mxu0
    %v1815 = vadd.f32 0.0, %v1814
    %v1816 = vpop.f32.mrf.mxu0
    %v1817 = vadd.f32 0.0, %v1816
    %v1818 = vpop.f32.mrf.mxu0
    %v1819 = vadd.f32 0.0, %v1818
    %1820 = vmatprep.mubr.bf16.mxu0 %v437
    %1821 = vmatmul.mubr.bf16.gmra.mxu0 %v436
    %v1822 = vpop.f32.mrf.mxu0
    %v1823 = vadd.f32 0.0, %v1822
    %v1824 = vpop.f32.mrf.mxu0
    %v1825 = vadd.f32 0.0, %v1824
    %v1826 = vpop.f32.mrf.mxu0
    %v1827 = vadd.f32 0.0, %v1826
    %v1828 = vpop.f32.mrf.mxu0
    %v1829 = vadd.f32 0.0, %v1828
    %1830 = vmatprep.mubr.bf16.mxu0 %v441
    %1831 = vmatmul.mubr.bf16.gmra.mxu0 %v440
    %v1832 = vpop.f32.mrf.mxu0
    %v1833 = vadd.f32 0.0, %v1832
    %v1834 = vpop.f32.mrf.mxu0
    %v1835 = vadd.f32 0.0, %v1834
    %v1836 = vpop.f32.mrf.mxu0
    %v1837 = vadd.f32 0.0, %v1836
    %v1838 = vpop.f32.mrf.mxu0
    %v1839 = vadd.f32 0.0, %v1838
    %1840 = vmatprep.mubr.bf16.mxu0 %v445
    %1841 = vmatmul.mubr.bf16.gmra.mxu0 %v444
    %v1842 = vpop.f32.mrf.mxu0
    %v1843 = vadd.f32 0.0, %v1842
    %v1844 = vpop.f32.mrf.mxu0
    %v1845 = vadd.f32 0.0, %v1844
    %v1846 = vpop.f32.mrf.mxu0
    %v1847 = vadd.f32 0.0, %v1846
    %v1848 = vpop.f32.mrf.mxu0
    %v1849 = vadd.f32 0.0, %v1848
    %1850 = vmatprep.mubr.bf16.mxu0 %v449
    %1851 = vmatmul.mubr.bf16.gmra.mxu0 %v448
    %v1852 = vpop.f32.mrf.mxu0
    %v1853 = vadd.f32 0.0, %v1852
    %v1854 = vpop.f32.mrf.mxu0
    %v1855 = vadd.f32 0.0, %v1854
    %v1856 = vpop.f32.mrf.mxu0
    %v1857 = vadd.f32 0.0, %v1856
    %v1858 = vpop.f32.mrf.mxu0
    %v1859 = vadd.f32 0.0, %v1858
    %1860 = vmatprep.mubr.bf16.mxu0 %v453
    %1861 = vmatmul.mubr.bf16.gmra.mxu0 %v452
    %v1862 = vpop.f32.mrf.mxu0
    %v1863 = vadd.f32 0.0, %v1862
    %v1864 = vpop.f32.mrf.mxu0
    %v1865 = vadd.f32 0.0, %v1864
    %v1866 = vpop.f32.mrf.mxu0
    %v1867 = vadd.f32 0.0, %v1866
    %v1868 = vpop.f32.mrf.mxu0
    %v1869 = vadd.f32 0.0, %v1868
    %1870 = vmatprep.mubr.bf16.mxu0 %v457
    %1871 = vmatmul.mubr.bf16.gmra.mxu0 %v456
    %v1872 = vpop.f32.mrf.mxu0
    %v1873 = vadd.f32 0.0, %v1872
    %v1874 = vpop.f32.mrf.mxu0
    %v1875 = vadd.f32 0.0, %v1874
    %v1876 = vpop.f32.mrf.mxu0
    %v1877 = vadd.f32 0.0, %v1876
    %v1878 = vpop.f32.mrf.mxu0
    %v1879 = vadd.f32 0.0, %v1878
    %1880 = vmatprep.mubr.bf16.mxu0 %v461
    %1881 = vmatmul.mubr.bf16.gmra.mxu0 %v460
    %v1882 = vpop.f32.mrf.mxu0
    %v1883 = vadd.f32 0.0, %v1882
    %v1884 = vpop.f32.mrf.mxu0
    %v1885 = vadd.f32 0.0, %v1884
    %v1886 = vpop.f32.mrf.mxu0
    %v1887 = vadd.f32 0.0, %v1886
    %v1888 = vpop.f32.mrf.mxu0
    %v1889 = vadd.f32 0.0, %v1888
    %1890 = vmatprep.mubr.bf16.mxu0 %v465
    %1891 = vmatmul.mubr.bf16.gmra.mxu0 %v464
    %v1892 = vpop.f32.mrf.mxu0
    %v1893 = vadd.f32 0.0, %v1892
    %v1894 = vpop.f32.mrf.mxu0
    %v1895 = vadd.f32 0.0, %v1894
    %v1896 = vpop.f32.mrf.mxu0
    %v1897 = vadd.f32 0.0, %v1896
    %v1898 = vpop.f32.mrf.mxu0
    %v1899 = vadd.f32 0.0, %v1898
    %1900 = vdwg.mxu0
    %1901 = vmatprep.subr.bf16.mxu0 %v1229
    %1902 = vmatpush1.bf16.msra.mxu0 %v1228
    %1903 = vmatprep.subr.bf16.mxu0 %v1223
    %1904 = vmatpush1.bf16.msra.mxu0 %v1222
    %1905 = vmatprep.subr.bf16.mxu0 %v1217
    %1906 = vmatpush1.bf16.msra.mxu0 %v1216
    %1907 = vmatprep.subr.bf16.mxu0 %v1211
    %1908 = vmatpush1.bf16.msra.mxu0 %v1210
    %1909 = vmatprep.subr.bf16.mxu0 %v1205
    %1910 = vmatpush1.bf16.msra.mxu0 %v1204
    %1911 = vmatprep.subr.bf16.mxu0 %v1199
    %1912 = vmatpush1.bf16.msra.mxu0 %v1198
    %1913 = vmatprep.subr.bf16.mxu0 %v1193
    %1914 = vmatpush1.bf16.msra.mxu0 %v1192
    %1915 = vmatprep.subr.bf16.mxu0 %v1187
    %1916 = vmatpush1.bf16.msra.mxu0 %v1186
    %1917 = vmatprep.subr.bf16.mxu0 %v1277
    %1918 = vmatpush2.bf16.msra.mxu0 %v1276
    %1919 = vmatprep.subr.bf16.mxu0 %v1271
    %1920 = vmatpush2.bf16.msra.mxu0 %v1270
    %1921 = vmatprep.subr.bf16.mxu0 %v1265
    %1922 = vmatpush2.bf16.msra.mxu0 %v1264
    %1923 = vmatprep.subr.bf16.mxu0 %v1259
    %1924 = vmatpush2.bf16.msra.mxu0 %v1258
    %1925 = vmatprep.subr.bf16.mxu0 %v1253
    %1926 = vmatpush2.bf16.msra.mxu0 %v1252
    %1927 = vmatprep.subr.bf16.mxu0 %v1247
    %1928 = vmatpush2.bf16.msra.mxu0 %v1246
    %1929 = vmatprep.subr.bf16.mxu0 %v1241
    %1930 = vmatpush2.bf16.msra.mxu0 %v1240
    %1931 = vmatprep.subr.bf16.mxu0 %v1235
    %1932 = vmatpush2.bf16.msra.mxu0 %v1234
    %1933 = vmatprep.mubr.bf16.mxu0 %v427
    %1934 = vmatmul.mubr.bf16.gmra.mxu0 %v426
    %v1935 = vpop.f32.mrf.mxu0
    %v1936 = vadd.f32 %v1793, %v1935
    %v1937 = vpop.f32.mrf.mxu0
    %v1938 = vadd.f32 %v1795, %v1937
    %v1939 = vpop.f32.mrf.mxu0
    %v1940 = vadd.f32 %v1797, %v1939
    %v1941 = vpop.f32.mrf.mxu0
    %v1942 = vadd.f32 %v1799, %v1941
    %1943 = vmatprep.mubr.bf16.mxu0 %v431
    %1944 = vmatmul.mubr.bf16.gmra.mxu0 %v430
    %v1945 = vpop.f32.mrf.mxu0
    %v1946 = vadd.f32 %v1803, %v1945
    %v1947 = vpop.f32.mrf.mxu0
    %v1948 = vadd.f32 %v1805, %v1947
    %v1949 = vpop.f32.mrf.mxu0
    %v1950 = vadd.f32 %v1807, %v1949
    %v1951 = vpop.f32.mrf.mxu0
    %v1952 = vadd.f32 %v1809, %v1951
    %1953 = vmatprep.mubr.bf16.mxu0 %v435
    %1954 = vmatmul.mubr.bf16.gmra.mxu0 %v434
    %v1955 = vpop.f32.mrf.mxu0
    %v1956 = vadd.f32 %v1813, %v1955
    %v1957 = vpop.f32.mrf.mxu0
    %v1958 = vadd.f32 %v1815, %v1957
    %v1959 = vpop.f32.mrf.mxu0
    %v1960 = vadd.f32 %v1817, %v1959
    %v1961 = vpop.f32.mrf.mxu0
    %v1962 = vadd.f32 %v1819, %v1961
    %1963 = vmatprep.mubr.bf16.mxu0 %v439
    %1964 = vmatmul.mubr.bf16.gmra.mxu0 %v438
    %v1965 = vpop.f32.mrf.mxu0
    %v1966 = vadd.f32 %v1823, %v1965
    %v1967 = vpop.f32.mrf.mxu0
    %v1968 = vadd.f32 %v1825, %v1967
    %v1969 = vpop.f32.mrf.mxu0
    %v1970 = vadd.f32 %v1827, %v1969
    %v1971 = vpop.f32.mrf.mxu0
    %v1972 = vadd.f32 %v1829, %v1971
    %1973 = vmatprep.mubr.bf16.mxu0 %v443
    %1974 = vmatmul.mubr.bf16.gmra.mxu0 %v442
    %v1975 = vpop.f32.mrf.mxu0
    %v1976 = vadd.f32 %v1833, %v1975
    %v1977 = vpop.f32.mrf.mxu0
    %v1978 = vadd.f32 %v1835, %v1977
    %v1979 = vpop.f32.mrf.mxu0
    %v1980 = vadd.f32 %v1837, %v1979
    %v1981 = vpop.f32.mrf.mxu0
    %v1982 = vadd.f32 %v1839, %v1981
    %1983 = vmatprep.mubr.bf16.mxu0 %v447
    %1984 = vmatmul.mubr.bf16.gmra.mxu0 %v446
    %v1985 = vpop.f32.mrf.mxu0
    %v1986 = vadd.f32 %v1843, %v1985
    %v1987 = vpop.f32.mrf.mxu0
    %v1988 = vadd.f32 %v1845, %v1987
    %v1989 = vpop.f32.mrf.mxu0
    %v1990 = vadd.f32 %v1847, %v1989
    %v1991 = vpop.f32.mrf.mxu0
    %v1992 = vadd.f32 %v1849, %v1991
    %1993 = vmatprep.mubr.bf16.mxu0 %v451
    %1994 = vmatmul.mubr.bf16.gmra.mxu0 %v450
    %v1995 = vpop.f32.mrf.mxu0
    %v1996 = vadd.f32 %v1853, %v1995
    %v1997 = vpop.f32.mrf.mxu0
    %v1998 = vadd.f32 %v1855, %v1997
    %v1999 = vpop.f32.mrf.mxu0
    %v2000 = vadd.f32 %v1857, %v1999
    %v2001 = vpop.f32.mrf.mxu0
    %v2002 = vadd.f32 %v1859, %v2001
    %2003 = vmatprep.mubr.bf16.mxu0 %v455
    %2004 = vmatmul.mubr.bf16.gmra.mxu0 %v454
    %v2005 = vpop.f32.mrf.mxu0
    %v2006 = vadd.f32 %v1863, %v2005
    %v2007 = vpop.f32.mrf.mxu0
    %v2008 = vadd.f32 %v1865, %v2007
    %v2009 = vpop.f32.mrf.mxu0
    %v2010 = vadd.f32 %v1867, %v2009
    %v2011 = vpop.f32.mrf.mxu0
    %v2012 = vadd.f32 %v1869, %v2011
    %2013 = vmatprep.mubr.bf16.mxu0 %v459
    %2014 = vmatmul.mubr.bf16.gmra.mxu0 %v458
    %v2015 = vpop.f32.mrf.mxu0
    %v2016 = vadd.f32 %v1873, %v2015
    %v2017 = vpop.f32.mrf.mxu0
    %v2018 = vadd.f32 %v1875, %v2017
    %v2019 = vpop.f32.mrf.mxu0
    %v2020 = vadd.f32 %v1877, %v2019
    %v2021 = vpop.f32.mrf.mxu0
    %v2022 = vadd.f32 %v1879, %v2021
    %2023 = vmatprep.mubr.bf16.mxu0 %v463
    %2024 = vmatmul.mubr.bf16.gmra.mxu0 %v462
    %v2025 = vpop.f32.mrf.mxu0
    %v2026 = vadd.f32 %v1883, %v2025
    %v2027 = vpop.f32.mrf.mxu0
    %v2028 = vadd.f32 %v1885, %v2027
    %v2029 = vpop.f32.mrf.mxu0
    %v2030 = vadd.f32 %v1887, %v2029
    %v2031 = vpop.f32.mrf.mxu0
    %v2032 = vadd.f32 %v1889, %v2031
    %2033 = vmatprep.mubr.bf16.mxu0 %v467
    %2034 = vmatmul.mubr.bf16.gmra.mxu0 %v466
    %v2035 = vpop.f32.mrf.mxu0
    %v2036 = vadd.f32 %v1893, %v2035
    %v2037 = vpop.f32.mrf.mxu0
    %v2038 = vadd.f32 %v1895, %v2037
    %v2039 = vpop.f32.mrf.mxu0
    %v2040 = vadd.f32 %v1897, %v2039
    %v2041 = vpop.f32.mrf.mxu0
    %v2042 = vadd.f32 %v1899, %v2041
    %2043 = vdwg.mxu0
    %2044 = vmatprep.subr.bf16.mxu0 %v1135
    %2045 = vmatpush1.bf16.msra.mxu0 %v1134
    %2046 = vmatprep.subr.bf16.mxu0 %v1129
    %2047 = vmatpush1.bf16.msra.mxu0 %v1128
    %2048 = vmatprep.subr.bf16.mxu0 %v1123
    %2049 = vmatpush1.bf16.msra.mxu0 %v1122
    %2050 = vmatprep.subr.bf16.mxu0 %v1117
    %2051 = vmatpush1.bf16.msra.mxu0 %v1116
    %2052 = vmatprep.subr.bf16.mxu0 %v1111
    %2053 = vmatpush1.bf16.msra.mxu0 %v1110
    %2054 = vmatprep.subr.bf16.mxu0 %v1105
    %2055 = vmatpush1.bf16.msra.mxu0 %v1104
    %2056 = vmatprep.subr.bf16.mxu0 %v1099
    %2057 = vmatpush1.bf16.msra.mxu0 %v1098
    %2058 = vmatprep.subr.bf16.mxu0 %v1093
    %2059 = vmatpush1.bf16.msra.mxu0 %v1092
    %2060 = vmatprep.subr.bf16.mxu0 %v1183
    %2061 = vmatpush2.bf16.msra.mxu0 %v1182
    %2062 = vmatprep.subr.bf16.mxu0 %v1177
    %2063 = vmatpush2.bf16.msra.mxu0 %v1176
    %2064 = vmatprep.subr.bf16.mxu0 %v1171
    %2065 = vmatpush2.bf16.msra.mxu0 %v1170
    %2066 = vmatprep.subr.bf16.mxu0 %v1165
    %2067 = vmatpush2.bf16.msra.mxu0 %v1164
    %2068 = vmatprep.subr.bf16.mxu0 %v1159
    %2069 = vmatpush2.bf16.msra.mxu0 %v1158
    %2070 = vmatprep.subr.bf16.mxu0 %v1153
    %2071 = vmatpush2.bf16.msra.mxu0 %v1152
    %2072 = vmatprep.subr.bf16.mxu0 %v1147
    %2073 = vmatpush2.bf16.msra.mxu0 %v1146
    %2074 = vmatprep.subr.bf16.mxu0 %v1141
    %2075 = vmatpush2.bf16.msra.mxu0 %v1140
    %2076 = vmatprep.mubr.bf16.mxu0 %v425
    %2077 = vmatmul.mubr.bf16.gmra.mxu0 %v424
    %v2078 = vpop.f32.mrf.mxu0
    %v2079 = vadd.f32 0.0, %v2078
    %v2080 = vpop.f32.mrf.mxu0
    %v2081 = vadd.f32 0.0, %v2080
    %v2082 = vpop.f32.mrf.mxu0
    %v2083 = vadd.f32 0.0, %v2082
    %v2084 = vpop.f32.mrf.mxu0
    %v2085 = vadd.f32 0.0, %v2084
    %2086 = vmatprep.mubr.bf16.mxu0 %v429
    %2087 = vmatmul.mubr.bf16.gmra.mxu0 %v428
    %v2088 = vpop.f32.mrf.mxu0
    %v2089 = vadd.f32 0.0, %v2088
    %v2090 = vpop.f32.mrf.mxu0
    %v2091 = vadd.f32 0.0, %v2090
    %v2092 = vpop.f32.mrf.mxu0
    %v2093 = vadd.f32 0.0, %v2092
    %v2094 = vpop.f32.mrf.mxu0
    %v2095 = vadd.f32 0.0, %v2094
    %2096 = vmatprep.mubr.bf16.mxu0 %v433
    %2097 = vmatmul.mubr.bf16.gmra.mxu0 %v432
    %v2098 = vpop.f32.mrf.mxu0
    %v2099 = vadd.f32 0.0, %v2098
    %v2100 = vpop.f32.mrf.mxu0
    %v2101 = vadd.f32 0.0, %v2100
    %v2102 = vpop.f32.mrf.mxu0
    %v2103 = vadd.f32 0.0, %v2102
    %v2104 = vpop.f32.mrf.mxu0
    %v2105 = vadd.f32 0.0, %v2104
    %2106 = vmatprep.mubr.bf16.mxu0 %v437
    %2107 = vmatmul.mubr.bf16.gmra.mxu0 %v436
    %v2108 = vpop.f32.mrf.mxu0
    %v2109 = vadd.f32 0.0, %v2108
    %v2110 = vpop.f32.mrf.mxu0
    %v2111 = vadd.f32 0.0, %v2110
    %v2112 = vpop.f32.mrf.mxu0
    %v2113 = vadd.f32 0.0, %v2112
    %v2114 = vpop.f32.mrf.mxu0
    %v2115 = vadd.f32 0.0, %v2114
    %2116 = vmatprep.mubr.bf16.mxu0 %v441
    %2117 = vmatmul.mubr.bf16.gmra.mxu0 %v440
    %v2118 = vpop.f32.mrf.mxu0
    %v2119 = vadd.f32 0.0, %v2118
    %v2120 = vpop.f32.mrf.mxu0
    %v2121 = vadd.f32 0.0, %v2120
    %v2122 = vpop.f32.mrf.mxu0
    %v2123 = vadd.f32 0.0, %v2122
    %v2124 = vpop.f32.mrf.mxu0
    %v2125 = vadd.f32 0.0, %v2124
    %2126 = vmatprep.mubr.bf16.mxu0 %v445
    %2127 = vmatmul.mubr.bf16.gmra.mxu0 %v444
    %v2128 = vpop.f32.mrf.mxu0
    %v2129 = vadd.f32 0.0, %v2128
    %v2130 = vpop.f32.mrf.mxu0
    %v2131 = vadd.f32 0.0, %v2130
    %v2132 = vpop.f32.mrf.mxu0
    %v2133 = vadd.f32 0.0, %v2132
    %v2134 = vpop.f32.mrf.mxu0
    %v2135 = vadd.f32 0.0, %v2134
    %2136 = vmatprep.mubr.bf16.mxu0 %v449
    %2137 = vmatmul.mubr.bf16.gmra.mxu0 %v448
    %v2138 = vpop.f32.mrf.mxu0
    %v2139 = vadd.f32 0.0, %v2138
    %v2140 = vpop.f32.mrf.mxu0
    %v2141 = vadd.f32 0.0, %v2140
    %v2142 = vpop.f32.mrf.mxu0
    %v2143 = vadd.f32 0.0, %v2142
    %v2144 = vpop.f32.mrf.mxu0
    %v2145 = vadd.f32 0.0, %v2144
    %2146 = vmatprep.mubr.bf16.mxu0 %v453
    %2147 = vmatmul.mubr.bf16.gmra.mxu0 %v452
    %v2148 = vpop.f32.mrf.mxu0
    %v2149 = vadd.f32 0.0, %v2148
    %v2150 = vpop.f32.mrf.mxu0
    %v2151 = vadd.f32 0.0, %v2150
    %v2152 = vpop.f32.mrf.mxu0
    %v2153 = vadd.f32 0.0, %v2152
    %v2154 = vpop.f32.mrf.mxu0
    %v2155 = vadd.f32 0.0, %v2154
    %2156 = vmatprep.mubr.bf16.mxu0 %v457
    %2157 = vmatmul.mubr.bf16.gmra.mxu0 %v456
    %v2158 = vpop.f32.mrf.mxu0
    %v2159 = vadd.f32 0.0, %v2158
    %v2160 = vpop.f32.mrf.mxu0
    %v2161 = vadd.f32 0.0, %v2160
    %v2162 = vpop.f32.mrf.mxu0
    %v2163 = vadd.f32 0.0, %v2162
    %v2164 = vpop.f32.mrf.mxu0
    %v2165 = vadd.f32 0.0, %v2164
    %2166 = vmatprep.mubr.bf16.mxu0 %v461
    %2167 = vmatmul.mubr.bf16.gmra.mxu0 %v460
    %v2168 = vpop.f32.mrf.mxu0
    %v2169 = vadd.f32 0.0, %v2168
    %v2170 = vpop.f32.mrf.mxu0
    %v2171 = vadd.f32 0.0, %v2170
    %v2172 = vpop.f32.mrf.mxu0
    %v2173 = vadd.f32 0.0, %v2172
    %v2174 = vpop.f32.mrf.mxu0
    %v2175 = vadd.f32 0.0, %v2174
    %2176 = vmatprep.mubr.bf16.mxu0 %v465
    %2177 = vmatmul.mubr.bf16.gmra.mxu0 %v464
    %v2178 = vpop.f32.mrf.mxu0
    %v2179 = vadd.f32 0.0, %v2178
    %v2180 = vpop.f32.mrf.mxu0
    %v2181 = vadd.f32 0.0, %v2180
    %v2182 = vpop.f32.mrf.mxu0
    %v2183 = vadd.f32 0.0, %v2182
    %v2184 = vpop.f32.mrf.mxu0
    %v2185 = vadd.f32 0.0, %v2184
    %2186 = vdwg.mxu0
    %2187 = vmatprep.subr.bf16.mxu0 %v1231
    %2188 = vmatpush1.bf16.msra.mxu0 %v1230
    %2189 = vmatprep.subr.bf16.mxu0 %v1225
    %2190 = vmatpush1.bf16.msra.mxu0 %v1224
    %2191 = vmatprep.subr.bf16.mxu0 %v1219
    %2192 = vmatpush1.bf16.msra.mxu0 %v1218
    %2193 = vmatprep.subr.bf16.mxu0 %v1213
    %2194 = vmatpush1.bf16.msra.mxu0 %v1212
    %2195 = vmatprep.subr.bf16.mxu0 %v1207
    %2196 = vmatpush1.bf16.msra.mxu0 %v1206
    %2197 = vmatprep.subr.bf16.mxu0 %v1201
    %2198 = vmatpush1.bf16.msra.mxu0 %v1200
    %2199 = vmatprep.subr.bf16.mxu0 %v1195
    %2200 = vmatpush1.bf16.msra.mxu0 %v1194
    %2201 = vmatprep.subr.bf16.mxu0 %v1189
    %2202 = vmatpush1.bf16.msra.mxu0 %v1188
    %2203 = vmatprep.subr.bf16.mxu0 %v1279
    %2204 = vmatpush2.bf16.msra.mxu0 %v1278
    %2205 = vmatprep.subr.bf16.mxu0 %v1273
    %2206 = vmatpush2.bf16.msra.mxu0 %v1272
    %2207 = vmatprep.subr.bf16.mxu0 %v1267
    %2208 = vmatpush2.bf16.msra.mxu0 %v1266
    %2209 = vmatprep.subr.bf16.mxu0 %v1261
    %2210 = vmatpush2.bf16.msra.mxu0 %v1260
    %2211 = vmatprep.subr.bf16.mxu0 %v1255
    %2212 = vmatpush2.bf16.msra.mxu0 %v1254
    %2213 = vmatprep.subr.bf16.mxu0 %v1249
    %2214 = vmatpush2.bf16.msra.mxu0 %v1248
    %2215 = vmatprep.subr.bf16.mxu0 %v1243
    %2216 = vmatpush2.bf16.msra.mxu0 %v1242
    %2217 = vmatprep.subr.bf16.mxu0 %v1237
    %2218 = vmatpush2.bf16.msra.mxu0 %v1236
    %2219 = vmatprep.mubr.bf16.mxu0 %v427
    %2220 = vmatmul.mubr.bf16.gmra.mxu0 %v426
    %v2221 = vpop.f32.mrf.mxu0
    %v2222 = vadd.f32 %v2079, %v2221
    %v2223 = vpop.f32.mrf.mxu0
    %v2224 = vadd.f32 %v2081, %v2223
    %v2225 = vpop.f32.mrf.mxu0
    %v2226 = vadd.f32 %v2083, %v2225
    %v2227 = vpop.f32.mrf.mxu0
    %v2228 = vadd.f32 %v2085, %v2227
    %2229 = vmatprep.mubr.bf16.mxu0 %v431
    %2230 = vmatmul.mubr.bf16.gmra.mxu0 %v430
    %v2231 = vpop.f32.mrf.mxu0
    %v2232 = vadd.f32 %v2089, %v2231
    %v2233 = vpop.f32.mrf.mxu0
    %v2234 = vadd.f32 %v2091, %v2233
    %v2235 = vpop.f32.mrf.mxu0
    %v2236 = vadd.f32 %v2093, %v2235
    %v2237 = vpop.f32.mrf.mxu0
    %v2238 = vadd.f32 %v2095, %v2237
    %2239 = vmatprep.mubr.bf16.mxu0 %v435
    %2240 = vmatmul.mubr.bf16.gmra.mxu0 %v434
    %v2241 = vpop.f32.mrf.mxu0
    %v2242 = vadd.f32 %v2099, %v2241
    %v2243 = vpop.f32.mrf.mxu0
    %v2244 = vadd.f32 %v2101, %v2243
    %v2245 = vpop.f32.mrf.mxu0
    %v2246 = vadd.f32 %v2103, %v2245
    %v2247 = vpop.f32.mrf.mxu0
    %v2248 = vadd.f32 %v2105, %v2247
    %2249 = vmatprep.mubr.bf16.mxu0 %v439
    %2250 = vmatmul.mubr.bf16.gmra.mxu0 %v438
    %v2251 = vpop.f32.mrf.mxu0
    %v2252 = vadd.f32 %v2109, %v2251
    %v2253 = vpop.f32.mrf.mxu0
    %v2254 = vadd.f32 %v2111, %v2253
    %v2255 = vpop.f32.mrf.mxu0
    %v2256 = vadd.f32 %v2113, %v2255
    %v2257 = vpop.f32.mrf.mxu0
    %v2258 = vadd.f32 %v2115, %v2257
    %2259 = vmatprep.mubr.bf16.mxu0 %v443
    %2260 = vmatmul.mubr.bf16.gmra.mxu0 %v442
    %v2261 = vpop.f32.mrf.mxu0
    %v2262 = vadd.f32 %v2119, %v2261
    %v2263 = vpop.f32.mrf.mxu0
    %v2264 = vadd.f32 %v2121, %v2263
    %v2265 = vpop.f32.mrf.mxu0
    %v2266 = vadd.f32 %v2123, %v2265
    %v2267 = vpop.f32.mrf.mxu0
    %v2268 = vadd.f32 %v2125, %v2267
    %2269 = vmatprep.mubr.bf16.mxu0 %v447
    %2270 = vmatmul.mubr.bf16.gmra.mxu0 %v446
    %v2271 = vpop.f32.mrf.mxu0
    %v2272 = vadd.f32 %v2129, %v2271
    %v2273 = vpop.f32.mrf.mxu0
    %v2274 = vadd.f32 %v2131, %v2273
    %v2275 = vpop.f32.mrf.mxu0
    %v2276 = vadd.f32 %v2133, %v2275
    %v2277 = vpop.f32.mrf.mxu0
    %v2278 = vadd.f32 %v2135, %v2277
    %2279 = vmatprep.mubr.bf16.mxu0 %v451
    %2280 = vmatmul.mubr.bf16.gmra.mxu0 %v450
    %v2281 = vpop.f32.mrf.mxu0
    %v2282 = vadd.f32 %v2139, %v2281
    %v2283 = vpop.f32.mrf.mxu0
    %v2284 = vadd.f32 %v2141, %v2283
    %v2285 = vpop.f32.mrf.mxu0
    %v2286 = vadd.f32 %v2143, %v2285
    %v2287 = vpop.f32.mrf.mxu0
    %v2288 = vadd.f32 %v2145, %v2287
    %2289 = vmatprep.mubr.bf16.mxu0 %v455
    %2290 = vmatmul.mubr.bf16.gmra.mxu0 %v454
    %v2291 = vpop.f32.mrf.mxu0
    %v2292 = vadd.f32 %v2149, %v2291
    %v2293 = vpop.f32.mrf.mxu0
    %v2294 = vadd.f32 %v2151, %v2293
    %v2295 = vpop.f32.mrf.mxu0
    %v2296 = vadd.f32 %v2153, %v2295
    %v2297 = vpop.f32.mrf.mxu0
    %v2298 = vadd.f32 %v2155, %v2297
    %2299 = vmatprep.mubr.bf16.mxu0 %v459
    %2300 = vmatmul.mubr.bf16.gmra.mxu0 %v458
    %v2301 = vpop.f32.mrf.mxu0
    %v2302 = vadd.f32 %v2159, %v2301
    %v2303 = vpop.f32.mrf.mxu0
    %v2304 = vadd.f32 %v2161, %v2303
    %v2305 = vpop.f32.mrf.mxu0
    %v2306 = vadd.f32 %v2163, %v2305
    %v2307 = vpop.f32.mrf.mxu0
    %v2308 = vadd.f32 %v2165, %v2307
    %2309 = vmatprep.mubr.bf16.mxu0 %v463
    %2310 = vmatmul.mubr.bf16.gmra.mxu0 %v462
    %v2311 = vpop.f32.mrf.mxu0
    %v2312 = vadd.f32 %v2169, %v2311
    %v2313 = vpop.f32.mrf.mxu0
    %v2314 = vadd.f32 %v2171, %v2313
    %v2315 = vpop.f32.mrf.mxu0
    %v2316 = vadd.f32 %v2173, %v2315
    %v2317 = vpop.f32.mrf.mxu0
    %v2318 = vadd.f32 %v2175, %v2317
    %2319 = vmatprep.mubr.bf16.mxu0 %v467
    %2320 = vmatmul.mubr.bf16.gmra.mxu0 %v466
    %v2321 = vpop.f32.mrf.mxu0
    %v2322 = vadd.f32 %v2179, %v2321
    %v2323 = vpop.f32.mrf.mxu0
    %v2324 = vadd.f32 %v2181, %v2323
    %v2325 = vpop.f32.mrf.mxu0
    %v2326 = vadd.f32 %v2183, %v2325
    %v2327 = vpop.f32.mrf.mxu0
    %v2328 = vadd.f32 %v2185, %v2327
    %2329 = vdwg.mxu0
    %v2330 = vmul.f32 %v1650, %v1650
    %v2331 = vmul.f32 %v1652, %v1652
    %v2332 = vmul.f32 %v1936, %v1936
    %v2333 = vmul.f32 %v1654, %v1654
    %v2334 = vmul.f32 %v1656, %v1656
    %v2335 = vmul.f32 %v1940, %v1940
    %v2336 = vmul.f32 %v1660, %v1660
    %v2337 = vmul.f32 %v1662, %v1662
    %v2338 = vmul.f32 %v1946, %v1946
    %v2339 = vmul.f32 %v1664, %v1664
    %v2340 = vmul.f32 %v1666, %v1666
    %v2341 = vmul.f32 %v1950, %v1950
    %v2342 = vmul.f32 %v1670, %v1670
    %v2343 = vmul.f32 %v1672, %v1672
    %v2344 = vmul.f32 %v1956, %v1956
    %v2345 = vmul.f32 %v1674, %v1674
    %v2346 = vmul.f32 %v1676, %v1676
    %v2347 = vmul.f32 %v1960, %v1960
    %v2348 = vmul.f32 %v1680, %v1680
    %v2349 = vmul.f32 %v1682, %v1682
    %v2350 = vmul.f32 %v1966, %v1966
    %v2351 = vmul.f32 %v1684, %v1684
    %v2352 = vmul.f32 %v1686, %v1686
    %v2353 = vmul.f32 %v1970, %v1970
    %v2354 = vmul.f32 %v1690, %v1690
    %v2355 = vmul.f32 %v1692, %v1692
    %v2356 = vmul.f32 %v1976, %v1976
    %v2357 = vmul.f32 %v1694, %v1694
    %v2358 = vmul.f32 %v1696, %v1696
    %v2359 = vmul.f32 %v1980, %v1980
    %v2360 = vmul.f32 %v1700, %v1700
    %v2361 = vmul.f32 %v1702, %v1702
    %v2362 = vmul.f32 %v1986, %v1986
    %v2363 = vmul.f32 %v1704, %v1704
    %v2364 = vmul.f32 %v1706, %v1706
    %v2365 = vmul.f32 %v1990, %v1990
    %v2366 = vmul.f32 %v1710, %v1710
    %v2367 = vmul.f32 %v1712, %v1712
    %v2368 = vmul.f32 %v1996, %v1996
    %v2369 = vmul.f32 %v1714, %v1714
    %v2370 = vmul.f32 %v1716, %v1716
    %v2371 = vmul.f32 %v2000, %v2000
    %v2372 = vmul.f32 %v1720, %v1720
    %v2373 = vmul.f32 %v1722, %v1722
    %v2374 = vmul.f32 %v2006, %v2006
    %v2375 = vmul.f32 %v1724, %v1724
    %v2376 = vmul.f32 %v1726, %v1726
    %v2377 = vmul.f32 %v2010, %v2010
    %v2378 = vmul.f32 %v1730, %v1730
    %v2379 = vmul.f32 %v1732, %v1732
    %v2380 = vmul.f32 %v2016, %v2016
    %v2381 = vmul.f32 %v1734, %v1734
    %v2382 = vmul.f32 %v1736, %v1736
    %v2383 = vmul.f32 %v2020, %v2020
    %v2384 = vmul.f32 %v1740, %v1740
    %v2385 = vmul.f32 %v1742, %v1742
    %v2386 = vmul.f32 %v2026, %v2026
    %v2387 = vmul.f32 %v1744, %v1744
    %v2388 = vmul.f32 %v1746, %v1746
    %v2389 = vmul.f32 %v2030, %v2030
    %v2390 = vmul.f32 %v1750, %v1750
    %v2391 = vmul.f32 %v1752, %v1752
    %v2392 = vmul.f32 %v2036, %v2036
    %v2393 = vmul.f32 %v1754, %v1754
    %v2394 = vmul.f32 %v1756, %v1756
    %v2395 = vmul.f32 %v2040, %v2040
    %v2396 = vmul.f32 %v1938, %v1938
    %v2397 = vmul.f32 %v2222, %v2222
    %v2398 = vmul.f32 %v2224, %v2224
    %v2399 = vmul.f32 %v1942, %v1942
    %v2400 = vmul.f32 %v2226, %v2226
    %v2401 = vmul.f32 %v2228, %v2228
    %v2402 = vmul.f32 %v1948, %v1948
    %v2403 = vmul.f32 %v2232, %v2232
    %v2404 = vmul.f32 %v2234, %v2234
    %v2405 = vmul.f32 %v1952, %v1952
    %v2406 = vmul.f32 %v2236, %v2236
    %v2407 = vmul.f32 %v2238, %v2238
    %v2408 = vmul.f32 %v1958, %v1958
    %v2409 = vmul.f32 %v2242, %v2242
    %v2410 = vmul.f32 %v2244, %v2244
    %v2411 = vmul.f32 %v1962, %v1962
    %v2412 = vmul.f32 %v2246, %v2246
    %v2413 = vmul.f32 %v2248, %v2248
    %v2414 = vmul.f32 %v1968, %v1968
    %v2415 = vmul.f32 %v2252, %v2252
    %v2416 = vmul.f32 %v2254, %v2254
    %v2417 = vmul.f32 %v1972, %v1972
    %v2418 = vmul.f32 %v2256, %v2256
    %v2419 = vmul.f32 %v2258, %v2258
    %v2420 = vmul.f32 %v1978, %v1978
    %v2421 = vmul.f32 %v2262, %v2262
    %v2422 = vmul.f32 %v2264, %v2264
    %v2423 = vmul.f32 %v1982, %v1982
    %v2424 = vmul.f32 %v2266, %v2266
    %v2425 = vmul.f32 %v2268, %v2268
    %v2426 = vmul.f32 %v1988, %v1988
    %v2427 = vmul.f32 %v2272, %v2272
    %v2428 = vmul.f32 %v2274, %v2274
    %v2429 = vmul.f32 %v1992, %v1992
    %v2430 = vmul.f32 %v2276, %v2276
    %v2431 = vmul.f32 %v2278, %v2278
    %v2432 = vmul.f32 %v1998, %v1998
    %v2433 = vmul.f32 %v2282, %v2282
    %v2434 = vmul.f32 %v2284, %v2284
    %v2435 = vmul.f32 %v2002, %v2002
    %v2436 = vmul.f32 %v2286, %v2286
    %v2437 = vmul.f32 %v2288, %v2288
    %v2438 = vmul.f32 %v2008, %v2008
    %v2439 = vmul.f32 %v2292, %v2292
    %v2440 = vmul.f32 %v2294, %v2294
    %v2441 = vmul.f32 %v2012, %v2012
    %v2442 = vmul.f32 %v2296, %v2296
    %v2443 = vmul.f32 %v2298, %v2298
    %v2444 = vmul.f32 %v2018, %v2018
    %v2445 = vmul.f32 %v2302, %v2302
    %v2446 = vmul.f32 %v2304, %v2304
    %v2447 = vmul.f32 %v2022, %v2022
    %v2448 = vmul.f32 %v2306, %v2306
    %v2449 = vmul.f32 %v2308, %v2308
    %v2450 = vmul.f32 %v2028, %v2028
    %v2451 = vmul.f32 %v2312, %v2312
    %v2452 = vmul.f32 %v2314, %v2314
    %v2453 = vmul.f32 %v2032, %v2032
    %v2454 = vmul.f32 %v2316, %v2316
    %v2455 = vmul.f32 %v2318, %v2318
    %v2456 = vmul.f32 %v2038, %v2038
    %v2457 = vmul.f32 %v2322, %v2322
    %v2458 = vmul.f32 %v2324, %v2324
    %v2459 = vmul.f32 %v2042, %v2042
    %v2460 = vmul.f32 %v2326, %v2326
    %v2461 = vmul.f32 %v2328, %v2328
    %v2462 = vadd.f32 %v2330, %v2396
    %v2463 = vadd.f32 %v2331, %v2397
    %v2464 = vadd.f32 %v2332, %v2398
    %v2465 = vadd.f32 %v2333, %v2399
    %v2466 = vadd.f32 %v2334, %v2400
    %v2467 = vadd.f32 %v2335, %v2401
    %v2468 = vadd.f32 %v2336, %v2402
    %v2469 = vadd.f32 %v2337, %v2403
    %v2470 = vadd.f32 %v2338, %v2404
    %v2471 = vadd.f32 %v2339, %v2405
    %v2472 = vadd.f32 %v2340, %v2406
    %v2473 = vadd.f32 %v2341, %v2407
    %v2474 = vadd.f32 %v2342, %v2408
    %v2475 = vadd.f32 %v2343, %v2409
    %v2476 = vadd.f32 %v2344, %v2410
    %v2477 = vadd.f32 %v2345, %v2411
    %v2478 = vadd.f32 %v2346, %v2412
    %v2479 = vadd.f32 %v2347, %v2413
    %v2480 = vadd.f32 %v2348, %v2414
    %v2481 = vadd.f32 %v2349, %v2415
    %v2482 = vadd.f32 %v2350, %v2416
    %v2483 = vadd.f32 %v2351, %v2417
    %v2484 = vadd.f32 %v2352, %v2418
    %v2485 = vadd.f32 %v2353, %v2419
    %v2486 = vadd.f32 %v2354, %v2420
    %v2487 = vadd.f32 %v2355, %v2421
    %v2488 = vadd.f32 %v2356, %v2422
    %v2489 = vadd.f32 %v2357, %v2423
    %v2490 = vadd.f32 %v2358, %v2424
    %v2491 = vadd.f32 %v2359, %v2425
    %v2492 = vadd.f32 %v2360, %v2426
    %v2493 = vadd.f32 %v2361, %v2427
    %v2494 = vadd.f32 %v2362, %v2428
    %v2495 = vadd.f32 %v2363, %v2429
    %v2496 = vadd.f32 %v2364, %v2430
    %v2497 = vadd.f32 %v2365, %v2431
    %v2498 = vadd.f32 %v2366, %v2432
    %v2499 = vadd.f32 %v2367, %v2433
    %v2500 = vadd.f32 %v2368, %v2434
    %v2501 = vadd.f32 %v2369, %v2435
    %v2502 = vadd.f32 %v2370, %v2436
    %v2503 = vadd.f32 %v2371, %v2437
    %v2504 = vadd.f32 %v2372, %v2438
    %v2505 = vadd.f32 %v2373, %v2439
    %v2506 = vadd.f32 %v2374, %v2440
    %v2507 = vadd.f32 %v2375, %v2441
    %v2508 = vadd.f32 %v2376, %v2442
    %v2509 = vadd.f32 %v2377, %v2443
    %v2510 = vadd.f32 %v2378, %v2444
    %v2511 = vadd.f32 %v2379, %v2445
    %v2512 = vadd.f32 %v2380, %v2446
    %v2513 = vadd.f32 %v2381, %v2447
    %v2514 = vadd.f32 %v2382, %v2448
    %v2515 = vadd.f32 %v2383, %v2449
    %v2516 = vadd.f32 %v2384, %v2450
    %v2517 = vadd.f32 %v2385, %v2451
    %v2518 = vadd.f32 %v2386, %v2452
    %v2519 = vadd.f32 %v2387, %v2453
    %v2520 = vadd.f32 %v2388, %v2454
    %v2521 = vadd.f32 %v2389, %v2455
    %v2522 = vadd.f32 %v2390, %v2456
    %v2523 = vadd.f32 %v2391, %v2457
    %v2524 = vadd.f32 %v2392, %v2458
    %v2525 = vadd.f32 %v2393, %v2459
    %v2526 = vadd.f32 %v2394, %v2460
    %v2527 = vadd.f32 %v2395, %v2461
    %v2528 = vld [vmem:[#allocation7] sm:$0xff]
    %v2529 = vld [vmem:[#allocation7 + $0x8] sm:$0xff]
    %v2530 = vld [vmem:[#allocation7 + $0x10] sm:$0xff]
    %v2531 = vld [vmem:[#allocation7 + $0x18] sm:$0xff]
    %v2532 = vld [vmem:[#allocation7 + $0x20] sm:$0xff]
    %v2533 = vld [vmem:[#allocation7 + $0x28] sm:$0xff]
    %v2534 = vld [vmem:[#allocation7 + $0x30] sm:$0xff]
    %v2535 = vld [vmem:[#allocation7 + $0x38] sm:$0xff]
    %v2536 = vld [vmem:[#allocation7 + $0x40] sm:$0xff]
    %v2537 = vld [vmem:[#allocation7 + $0x48] sm:$0xff]
    %v2538 = vld [vmem:[#allocation7 + $0x50] sm:$0xff]
    %v2539 = vld [vmem:[#allocation7 + $0x58] sm:$0xff]
    %v2540 = vld [vmem:[#allocation7 + $0x60] sm:$0xff]
    %v2541 = vld [vmem:[#allocation7 + $0x68] sm:$0xff]
    %v2542 = vld [vmem:[#allocation7 + $0x70] sm:$0xff]
    %v2543 = vld [vmem:[#allocation7 + $0x78] sm:$0xff]
    %v2544 = vld [vmem:[#allocation7 + $0x80] sm:$0xff]
    %v2545 = vld [vmem:[#allocation7 + $0x88] sm:$0xff]
    %v2546 = vld [vmem:[#allocation7 + $0x90] sm:$0xff]
    %v2547 = vld [vmem:[#allocation7 + $0x98] sm:$0xff]
    %v2548 = vld [vmem:[#allocation7 + $0xa0] sm:$0xff]
    %v2549 = vld [vmem:[#allocation7 + $0xa8] sm:$0xff]
    %v2550 = vld [vmem:[#allocation7 + $0xb0] sm:$0xff]
    %v2551 = vld [vmem:[#allocation7 + $0xb8] sm:$0xff]
    %v2552 = vld [vmem:[#allocation7 + $0xc0] sm:$0xff]
    %v2553 = vld [vmem:[#allocation7 + $0xc8] sm:$0xff]
    %v2554 = vld [vmem:[#allocation7 + $0xd0] sm:$0xff]
    %v2555 = vld [vmem:[#allocation7 + $0xd8] sm:$0xff]
    %v2556 = vld [vmem:[#allocation7 + $0xe0] sm:$0xff]
    %v2557 = vld [vmem:[#allocation7 + $0xe8] sm:$0xff]
    %v2558 = vld [vmem:[#allocation7 + $0xf0] sm:$0xff]
    %v2559 = vld [vmem:[#allocation7 + $0xf8] sm:$0xff]
    %v2560 = vld [vmem:[#allocation7 + $0x100] sm:$0xff]
    %v2561 = vld [vmem:[#allocation7 + $0x108] sm:$0xff]
    %v2562 = vld [vmem:[#allocation7 + $0x110] sm:$0xff]
    %v2563 = vld [vmem:[#allocation7 + $0x118] sm:$0xff]
    %v2564 = vld [vmem:[#allocation7 + $0x120] sm:$0xff]
    %v2565 = vld [vmem:[#allocation7 + $0x128] sm:$0xff]
    %v2566 = vld [vmem:[#allocation7 + $0x130] sm:$0xff]
    %v2567 = vld [vmem:[#allocation7 + $0x138] sm:$0xff]
    %v2568 = vld [vmem:[#allocation7 + $0x140] sm:$0xff]
    %v2569 = vld [vmem:[#allocation7 + $0x148] sm:$0xff]
    %v2570 = vld [vmem:[#allocation7 + $0x150] sm:$0xff]
    %v2571 = vld [vmem:[#allocation7 + $0x158] sm:$0xff]
    %v2572 = vld [vmem:[#allocation7 + $0x160] sm:$0xff]
    %v2573 = vld [vmem:[#allocation7 + $0x168] sm:$0xff]
    %v2574 = vld [vmem:[#allocation7 + $0x170] sm:$0xff]
    %v2575 = vld [vmem:[#allocation7 + $0x178] sm:$0xff]
    %2576 = vmatprep.subr.mxu0 0.0
    %2577 = vmatpush1.msra.mxu0 %v2543
    %2578 = vmatprep.subr.mxu0 0.0
    %2579 = vmatpush1.msra.mxu0 %v2542
    %2580 = vmatprep.subr.mxu0 0.0
    %2581 = vmatpush1.msra.mxu0 %v2541
    %2582 = vmatprep.subr.mxu0 0.0
    %2583 = vmatpush1.msra.mxu0 %v2540
    %2584 = vmatprep.subr.mxu0 0.0
    %2585 = vmatpush1.msra.mxu0 %v2539
    %2586 = vmatprep.subr.mxu0 0.0
    %2587 = vmatpush1.msra.mxu0 %v2538
    %2588 = vmatprep.subr.mxu0 0.0
    %2589 = vmatpush1.msra.mxu0 %v2537
    %2590 = vmatprep.subr.mxu0 0.0
    %2591 = vmatpush1.msra.mxu0 %v2536
    %2592 = vmatprep.subr.mxu0 0.0
    %2593 = vmatpush1.msra.mxu0 %v2535
    %2594 = vmatprep.subr.mxu0 0.0
    %2595 = vmatpush1.msra.mxu0 %v2534
    %2596 = vmatprep.subr.mxu0 0.0
    %2597 = vmatpush1.msra.mxu0 %v2533
    %2598 = vmatprep.subr.mxu0 0.0
    %2599 = vmatpush1.msra.mxu0 %v2532
    %2600 = vmatprep.subr.mxu0 0.0
    %2601 = vmatpush1.msra.mxu0 %v2531
    %2602 = vmatprep.subr.mxu0 0.0
    %2603 = vmatpush1.msra.mxu0 %v2530
    %2604 = vmatprep.subr.mxu0 0.0
    %2605 = vmatpush1.msra.mxu0 %v2529
    %2606 = vmatprep.subr.mxu0 0.0
    %2607 = vmatpush1.msra.mxu0 %v2528
    %2608 = vmatprep.subr.mxu0 0.0
    %2609 = vmatpush2.msra.mxu0 %v2559
    %2610 = vmatprep.subr.mxu0 0.0
    %2611 = vmatpush2.msra.mxu0 %v2558
    %2612 = vmatprep.subr.mxu0 0.0
    %2613 = vmatpush2.msra.mxu0 %v2557
    %2614 = vmatprep.subr.mxu0 0.0
    %2615 = vmatpush2.msra.mxu0 %v2556
    %2616 = vmatprep.subr.mxu0 0.0
    %2617 = vmatpush2.msra.mxu0 %v2555
    %2618 = vmatprep.subr.mxu0 0.0
    %2619 = vmatpush2.msra.mxu0 %v2554
    %2620 = vmatprep.subr.mxu0 0.0
    %2621 = vmatpush2.msra.mxu0 %v2553
    %2622 = vmatprep.subr.mxu0 0.0
    %2623 = vmatpush2.msra.mxu0 %v2552
    %2624 = vmatprep.subr.mxu0 0.0
    %2625 = vmatpush2.msra.mxu0 %v2551
    %2626 = vmatprep.subr.mxu0 0.0
    %2627 = vmatpush2.msra.mxu0 %v2550
    %2628 = vmatprep.subr.mxu0 0.0
    %2629 = vmatpush2.msra.mxu0 %v2549
    %2630 = vmatprep.subr.mxu0 0.0
    %2631 = vmatpush2.msra.mxu0 %v2548
    %2632 = vmatprep.subr.mxu0 0.0
    %2633 = vmatpush2.msra.mxu0 %v2547
    %2634 = vmatprep.subr.mxu0 0.0
    %2635 = vmatpush2.msra.mxu0 %v2546
    %2636 = vmatprep.subr.mxu0 0.0
    %2637 = vmatpush2.msra.mxu0 %v2545
    %2638 = vmatprep.subr.mxu0 0.0
    %2639 = vmatpush2.msra.mxu0 %v2544
    %2640 = vmatprep.mubr.f32.mxu0 %v2463
    %2641 = vmatmul.mubr.f32.gmra.mxu0 %v2462
    %v2642 = vpop.f32.mrf.mxu0
    %v2643 = vadd.f32 0.0, %v2642
    %v2644 = vpop.f32.mrf.mxu0
    %2645 = vmatprep.mubr.f32.mxu0 %v2466
    %2646 = vmatmul.mubr.f32.gmra.mxu0 %v2465
    %v2647 = vpop.f32.mrf.mxu0
    %v2648 = vadd.f32 0.0, %v2647
    %v2649 = vpop.f32.mrf.mxu0
    %2650 = vmatprep.mubr.f32.mxu0 %v2469
    %2651 = vmatmul.mubr.f32.gmra.mxu0 %v2468
    %v2652 = vpop.f32.mrf.mxu0
    %v2653 = vadd.f32 0.0, %v2652
    %v2654 = vpop.f32.mrf.mxu0
    %2655 = vmatprep.mubr.f32.mxu0 %v2472
    %2656 = vmatmul.mubr.f32.gmra.mxu0 %v2471
    %v2657 = vpop.f32.mrf.mxu0
    %v2658 = vadd.f32 0.0, %v2657
    %v2659 = vpop.f32.mrf.mxu0
    %2660 = vmatprep.mubr.f32.mxu0 %v2475
    %2661 = vmatmul.mubr.f32.gmra.mxu0 %v2474
    %v2662 = vpop.f32.mrf.mxu0
    %v2663 = vadd.f32 0.0, %v2662
    %v2664 = vpop.f32.mrf.mxu0
    %2665 = vmatprep.mubr.f32.mxu0 %v2478
    %2666 = vmatmul.mubr.f32.gmra.mxu0 %v2477
    %v2667 = vpop.f32.mrf.mxu0
    %v2668 = vadd.f32 0.0, %v2667
    %v2669 = vpop.f32.mrf.mxu0
    %2670 = vmatprep.mubr.f32.mxu0 %v2481
    %2671 = vmatmul.mubr.f32.gmra.mxu0 %v2480
    %v2672 = vpop.f32.mrf.mxu0
    %v2673 = vadd.f32 0.0, %v2672
    %v2674 = vpop.f32.mrf.mxu0
    %2675 = vmatprep.mubr.f32.mxu0 %v2484
    %2676 = vmatmul.mubr.f32.gmra.mxu0 %v2483
    %v2677 = vpop.f32.mrf.mxu0
    %v2678 = vadd.f32 0.0, %v2677
    %v2679 = vpop.f32.mrf.mxu0
    %2680 = vmatprep.mubr.f32.mxu0 %v2487
    %2681 = vmatmul.mubr.f32.gmra.mxu0 %v2486
    %v2682 = vpop.f32.mrf.mxu0
    %v2683 = vadd.f32 0.0, %v2682
    %v2684 = vpop.f32.mrf.mxu0
    %2685 = vmatprep.mubr.f32.mxu0 %v2490
    %2686 = vmatmul.mubr.f32.gmra.mxu0 %v2489
    %v2687 = vpop.f32.mrf.mxu0
    %v2688 = vadd.f32 0.0, %v2687
    %v2689 = vpop.f32.mrf.mxu0
    %2690 = vmatprep.mubr.f32.mxu0 %v2493
    %2691 = vmatmul.mubr.f32.gmra.mxu0 %v2492
    %v2692 = vpop.f32.mrf.mxu0
    %v2693 = vadd.f32 0.0, %v2692
    %v2694 = vpop.f32.mrf.mxu0
    %2695 = vmatprep.mubr.f32.mxu0 %v2496
    %2696 = vmatmul.mubr.f32.gmra.mxu0 %v2495
    %v2697 = vpop.f32.mrf.mxu0
    %v2698 = vadd.f32 0.0, %v2697
    %v2699 = vpop.f32.mrf.mxu0
    %2700 = vmatprep.mubr.f32.mxu0 %v2499
    %2701 = vmatmul.mubr.f32.gmra.mxu0 %v2498
    %v2702 = vpop.f32.mrf.mxu0
    %v2703 = vadd.f32 0.0, %v2702
    %v2704 = vpop.f32.mrf.mxu0
    %2705 = vmatprep.mubr.f32.mxu0 %v2502
    %2706 = vmatmul.mubr.f32.gmra.mxu0 %v2501
    %v2707 = vpop.f32.mrf.mxu0
    %v2708 = vadd.f32 0.0, %v2707
    %v2709 = vpop.f32.mrf.mxu0
    %2710 = vmatprep.mubr.f32.mxu0 %v2505
    %2711 = vmatmul.mubr.f32.gmra.mxu0 %v2504
    %v2712 = vpop.f32.mrf.mxu0
    %v2713 = vadd.f32 0.0, %v2712
    %v2714 = vpop.f32.mrf.mxu0
    %2715 = vmatprep.mubr.f32.mxu0 %v2508
    %2716 = vmatmul.mubr.f32.gmra.mxu0 %v2507
    %v2717 = vpop.f32.mrf.mxu0
    %v2718 = vadd.f32 0.0, %v2717
    %v2719 = vpop.f32.mrf.mxu0
    %2720 = vmatprep.mubr.f32.mxu0 %v2511
    %2721 = vmatmul.mubr.f32.gmra.mxu0 %v2510
    %v2722 = vpop.f32.mrf.mxu0
    %v2723 = vadd.f32 0.0, %v2722
    %v2724 = vpop.f32.mrf.mxu0
    %2725 = vmatprep.mubr.f32.mxu0 %v2514
    %2726 = vmatmul.mubr.f32.gmra.mxu0 %v2513
    %v2727 = vpop.f32.mrf.mxu0
    %v2728 = vadd.f32 0.0, %v2727
    %v2729 = vpop.f32.mrf.mxu0
    %2730 = vmatprep.mubr.f32.mxu0 %v2517
    %2731 = vmatmul.mubr.f32.gmra.mxu0 %v2516
    %v2732 = vpop.f32.mrf.mxu0
    %v2733 = vadd.f32 0.0, %v2732
    %v2734 = vpop.f32.mrf.mxu0
    %2735 = vmatprep.mubr.f32.mxu0 %v2520
    %2736 = vmatmul.mubr.f32.gmra.mxu0 %v2519
    %v2737 = vpop.f32.mrf.mxu0
    %v2738 = vadd.f32 0.0, %v2737
    %v2739 = vpop.f32.mrf.mxu0
    %2740 = vmatprep.mubr.f32.mxu0 %v2523
    %2741 = vmatmul.mubr.f32.gmra.mxu0 %v2522
    %v2742 = vpop.f32.mrf.mxu0
    %v2743 = vadd.f32 0.0, %v2742
    %v2744 = vpop.f32.mrf.mxu0
    %2745 = vmatprep.mubr.f32.mxu0 %v2526
    %2746 = vmatmul.mubr.f32.gmra.mxu0 %v2525
    %v2747 = vpop.f32.mrf.mxu0
    %v2748 = vadd.f32 0.0, %v2747
    %v2749 = vpop.f32.mrf.mxu0
    %2750 = vdwg.mxu0
    %2751 = vmatprep.subr.mxu0 0.0
    %2752 = vmatpush1.msra.mxu0 %v2575
    %2753 = vmatprep.subr.mxu0 0.0
    %2754 = vmatpush1.msra.mxu0 %v2574
    %2755 = vmatprep.subr.mxu0 0.0
    %2756 = vmatpush1.msra.mxu0 %v2573
    %2757 = vmatprep.subr.mxu0 0.0
    %2758 = vmatpush1.msra.mxu0 %v2572
    %2759 = vmatprep.subr.mxu0 0.0
    %2760 = vmatpush1.msra.mxu0 %v2571
    %2761 = vmatprep.subr.mxu0 0.0
    %2762 = vmatpush1.msra.mxu0 %v2570
    %2763 = vmatprep.subr.mxu0 0.0
    %2764 = vmatpush1.msra.mxu0 %v2569
    %2765 = vmatprep.subr.mxu0 0.0
    %2766 = vmatpush1.msra.mxu0 %v2568
    %2767 = vmatprep.subr.mxu0 0.0
    %2768 = vmatpush1.msra.mxu0 %v2567
    %2769 = vmatprep.subr.mxu0 0.0
    %2770 = vmatpush1.msra.mxu0 %v2566
    %2771 = vmatprep.subr.mxu0 0.0
    %2772 = vmatpush1.msra.mxu0 %v2565
    %2773 = vmatprep.subr.mxu0 0.0
    %2774 = vmatpush1.msra.mxu0 %v2564
    %2775 = vmatprep.subr.mxu0 0.0
    %2776 = vmatpush1.msra.mxu0 %v2563
    %2777 = vmatprep.subr.mxu0 0.0
    %2778 = vmatpush1.msra.mxu0 %v2562
    %2779 = vmatprep.subr.mxu0 0.0
    %2780 = vmatpush1.msra.mxu0 %v2561
    %2781 = vmatprep.subr.mxu0 0.0
    %2782 = vmatpush1.msra.mxu0 %v2560
    %2783 = vmatprep.subr.mxu0 0.0
    %2784 = vmatpush2.msra.mxu0 0.0
    %2785 = vmatprep.subr.mxu0 0.0
    %2786 = vmatpush2.msra.mxu0 0.0
    %2787 = vmatprep.subr.mxu0 0.0
    %2788 = vmatpush2.msra.mxu0 0.0
    %2789 = vmatprep.subr.mxu0 0.0
    %2790 = vmatpush2.msra.mxu0 0.0
    %2791 = vmatprep.subr.mxu0 0.0
    %2792 = vmatpush2.msra.mxu0 0.0
    %2793 = vmatprep.subr.mxu0 0.0
    %2794 = vmatpush2.msra.mxu0 0.0
    %2795 = vmatprep.subr.mxu0 0.0
    %2796 = vmatpush2.msra.mxu0 0.0
    %2797 = vmatprep.subr.mxu0 0.0
    %2798 = vmatpush2.msra.mxu0 0.0
    %2799 = vmatprep.subr.mxu0 0.0
    %2800 = vmatpush2.msra.mxu0 0.0
    %2801 = vmatprep.subr.mxu0 0.0
    %2802 = vmatpush2.msra.mxu0 0.0
    %2803 = vmatprep.subr.mxu0 0.0
    %2804 = vmatpush2.msra.mxu0 0.0
    %2805 = vmatprep.subr.mxu0 0.0
    %2806 = vmatpush2.msra.mxu0 0.0
    %2807 = vmatprep.subr.mxu0 0.0
    %2808 = vmatpush2.msra.mxu0 0.0
    %2809 = vmatprep.subr.mxu0 0.0
    %2810 = vmatpush2.msra.mxu0 0.0
    %2811 = vmatprep.subr.mxu0 0.0
    %2812 = vmatpush2.msra.mxu0 0.0
    %2813 = vmatprep.subr.mxu0 0.0
    %2814 = vmatpush2.msra.mxu0 0.0
    %2815 = vmatprep.mubr.f32.mxu0 0.0
    %2816 = vmatmul.mubr.f32.gmra.mxu0 %v2464
    %v2817 = vpop.f32.mrf.mxu0
    %v2818 = vadd.f32 %v2643, %v2817
    %v2819 = vpop.f32.mrf.mxu0
    %2820 = vmatprep.mubr.f32.mxu0 0.0
    %2821 = vmatmul.mubr.f32.gmra.mxu0 %v2467
    %v2822 = vpop.f32.mrf.mxu0
    %v2823 = vadd.f32 %v2648, %v2822
    %v2824 = vpop.f32.mrf.mxu0
    %2825 = vmatprep.mubr.f32.mxu0 0.0
    %2826 = vmatmul.mubr.f32.gmra.mxu0 %v2470
    %v2827 = vpop.f32.mrf.mxu0
    %v2828 = vadd.f32 %v2653, %v2827
    %v2829 = vpop.f32.mrf.mxu0
    %2830 = vmatprep.mubr.f32.mxu0 0.0
    %2831 = vmatmul.mubr.f32.gmra.mxu0 %v2473
    %v2832 = vpop.f32.mrf.mxu0
    %v2833 = vadd.f32 %v2658, %v2832
    %v2834 = vpop.f32.mrf.mxu0
    %2835 = vmatprep.mubr.f32.mxu0 0.0
    %2836 = vmatmul.mubr.f32.gmra.mxu0 %v2476
    %v2837 = vpop.f32.mrf.mxu0
    %v2838 = vadd.f32 %v2663, %v2837
    %v2839 = vpop.f32.mrf.mxu0
    %2840 = vmatprep.mubr.f32.mxu0 0.0
    %2841 = vmatmul.mubr.f32.gmra.mxu0 %v2479
    %v2842 = vpop.f32.mrf.mxu0
    %v2843 = vadd.f32 %v2668, %v2842
    %v2844 = vpop.f32.mrf.mxu0
    %2845 = vmatprep.mubr.f32.mxu0 0.0
    %2846 = vmatmul.mubr.f32.gmra.mxu0 %v2482
    %v2847 = vpop.f32.mrf.mxu0
    %v2848 = vadd.f32 %v2673, %v2847
    %v2849 = vpop.f32.mrf.mxu0
    %2850 = vmatprep.mubr.f32.mxu0 0.0
    %2851 = vmatmul.mubr.f32.gmra.mxu0 %v2485
    %v2852 = vpop.f32.mrf.mxu0
    %v2853 = vadd.f32 %v2678, %v2852
    %v2854 = vpop.f32.mrf.mxu0
    %2855 = vmatprep.mubr.f32.mxu0 0.0
    %2856 = vmatmul.mubr.f32.gmra.mxu0 %v2488
    %v2857 = vpop.f32.mrf.mxu0
    %v2858 = vadd.f32 %v2683, %v2857
    %v2859 = vpop.f32.mrf.mxu0
    %2860 = vmatprep.mubr.f32.mxu0 0.0
    %2861 = vmatmul.mubr.f32.gmra.mxu0 %v2491
    %v2862 = vpop.f32.mrf.mxu0
    %v2863 = vadd.f32 %v2688, %v2862
    %v2864 = vpop.f32.mrf.mxu0
    %2865 = vmatprep.mubr.f32.mxu0 0.0
    %2866 = vmatmul.mubr.f32.gmra.mxu0 %v2494
    %v2867 = vpop.f32.mrf.mxu0
    %v2868 = vadd.f32 %v2693, %v2867
    %v2869 = vpop.f32.mrf.mxu0
    %2870 = vmatprep.mubr.f32.mxu0 0.0
    %2871 = vmatmul.mubr.f32.gmra.mxu0 %v2497
    %v2872 = vpop.f32.mrf.mxu0
    %v2873 = vadd.f32 %v2698, %v2872
    %v2874 = vpop.f32.mrf.mxu0
    %2875 = vmatprep.mubr.f32.mxu0 0.0
    %2876 = vmatmul.mubr.f32.gmra.mxu0 %v2500
    %v2877 = vpop.f32.mrf.mxu0
    %v2878 = vadd.f32 %v2703, %v2877
    %v2879 = vpop.f32.mrf.mxu0
    %2880 = vmatprep.mubr.f32.mxu0 0.0
    %2881 = vmatmul.mubr.f32.gmra.mxu0 %v2503
    %v2882 = vpop.f32.mrf.mxu0
    %v2883 = vadd.f32 %v2708, %v2882
    %v2884 = vpop.f32.mrf.mxu0
    %2885 = vmatprep.mubr.f32.mxu0 0.0
    %2886 = vmatmul.mubr.f32.gmra.mxu0 %v2506
    %v2887 = vpop.f32.mrf.mxu0
    %v2888 = vadd.f32 %v2713, %v2887
    %v2889 = vpop.f32.mrf.mxu0
    %2890 = vmatprep.mubr.f32.mxu0 0.0
    %2891 = vmatmul.mubr.f32.gmra.mxu0 %v2509
    %v2892 = vpop.f32.mrf.mxu0
    %v2893 = vadd.f32 %v2718, %v2892
    %v2894 = vpop.f32.mrf.mxu0
    %2895 = vmatprep.mubr.f32.mxu0 0.0
    %2896 = vmatmul.mubr.f32.gmra.mxu0 %v2512
    %v2897 = vpop.f32.mrf.mxu0
    %v2898 = vadd.f32 %v2723, %v2897
    %v2899 = vpop.f32.mrf.mxu0
    %2900 = vmatprep.mubr.f32.mxu0 0.0
    %2901 = vmatmul.mubr.f32.gmra.mxu0 %v2515
    %v2902 = vpop.f32.mrf.mxu0
    %v2903 = vadd.f32 %v2728, %v2902
    %v2904 = vpop.f32.mrf.mxu0
    %2905 = vmatprep.mubr.f32.mxu0 0.0
    %2906 = vmatmul.mubr.f32.gmra.mxu0 %v2518
    %v2907 = vpop.f32.mrf.mxu0
    %v2908 = vadd.f32 %v2733, %v2907
    %v2909 = vpop.f32.mrf.mxu0
    %2910 = vmatprep.mubr.f32.mxu0 0.0
    %2911 = vmatmul.mubr.f32.gmra.mxu0 %v2521
    %v2912 = vpop.f32.mrf.mxu0
    %v2913 = vadd.f32 %v2738, %v2912
    %v2914 = vpop.f32.mrf.mxu0
    %2915 = vmatprep.mubr.f32.mxu0 0.0
    %2916 = vmatmul.mubr.f32.gmra.mxu0 %v2524
    %v2917 = vpop.f32.mrf.mxu0
    %v2918 = vadd.f32 %v2743, %v2917
    %v2919 = vpop.f32.mrf.mxu0
    %2920 = vmatprep.mubr.f32.mxu0 0.0
    %2921 = vmatmul.mubr.f32.gmra.mxu0 %v2527
    %v2922 = vpop.f32.mrf.mxu0
    %v2923 = vadd.f32 %v2748, %v2922
    %v2924 = vpop.f32.mrf.mxu0
    %2925 = vdwg.mxu0
    %2926 = vst [vmem:[#allocation8] sm:$0xff] %v2818
    %2927 = vst [vmem:[#allocation8 + $0x8] sm:$0xff] %v2823
    %2928 = vst [vmem:[#allocation8 + $0x10] sm:$0xff] %v2828
    %2929 = vst [vmem:[#allocation8 + $0x18] sm:$0xff] %v2833
    %2930 = vst [vmem:[#allocation8 + $0x20] sm:$0xff] %v2838
    %2931 = vst [vmem:[#allocation8 + $0x28] sm:$0xff] %v2843
    %2932 = vst [vmem:[#allocation8 + $0x30] sm:$0xff] %v2848
    %2933 = vst [vmem:[#allocation8 + $0x38] sm:$0xff] %v2853
    %2934 = vst [vmem:[#allocation8 + $0x40] sm:$0xff] %v2858
    %2935 = vst [vmem:[#allocation8 + $0x48] sm:$0xff] %v2863
    %2936 = vst [vmem:[#allocation8 + $0x50] sm:$0xff] %v2868
    %2937 = vst [vmem:[#allocation8 + $0x58] sm:$0xff] %v2873
    %2938 = vst [vmem:[#allocation8 + $0x60] sm:$0xff] %v2878
    %2939 = vst [vmem:[#allocation8 + $0x68] sm:$0xff] %v2883
    %2940 = vst [vmem:[#allocation8 + $0x70] sm:$0xff] %v2888
    %2941 = vst [vmem:[#allocation8 + $0x78] sm:$0xff] %v2893
    %2942 = vst [vmem:[#allocation8 + $0x80] sm:$0xff] %v2898
    %2943 = vst [vmem:[#allocation8 + $0x88] sm:$0xff] %v2903
    %2944 = vst [vmem:[#allocation8 + $0x90] sm:$0xff] %v2908
    %2945 = vst [vmem:[#allocation8 + $0x98] sm:$0xff] %v2913
    %2946 = vst [vmem:[#allocation8 + $0xa0] sm:$0xff] %v2918
    %2947 = vst [vmem:[#allocation8 + $0xa8] sm:$0xff] %v2923
    // Predicated region
    $region26: #{_melspec_call.1} parent=1 // pred_check
      _
    $region27: #{_melspec_call.1} parent=1 // pred_check_branch
      %2949 = sbr.rel (0) target = $region29
    $region28: #{_melspec_call.1} parent=1 // pred_region
      %s2951 = ssub.s32 2816, 2816
      %2952 = vsyncadd [#allocation4], %s2951
      %s2953 = sshll.u32 [#allocation8], 4
      %s2954 = int_to_ptr.vmem [resolvable:$true] %s2953
      %2959 = dma.vmem_to_hbm [thread:$0]  %s2954, 2816, %s3, [#allocation4], 128, 128, 8
    $region29: #{_melspec_call.1} parent=1 // pred_fallthru
      _
    // Predicated region
    $region30: #{_melspec_call.1} parent=1 // pred_check
      _
    $region31: #{_melspec_call.1} parent=1 // pred_check_branch
      %2961 = sbr.rel (0) target = $region33
    $region32: #{_melspec_call.1} parent=1 // pred_region
      %2962 = dma.done [#allocation4], 2816
    $region33: #{_melspec_call.1} parent=1 // pred_fallthru
      _
    %2963 = vsyncpa [#allocation3], 1
    %2964 = vsyncpa [#allocation6], 1
    %2965 = vsyncpa [#allocation4], 1

</llo_original>
